<compile_context>
chip_gen: v5e
topology: v5e:2x2
jax: 0.10.0
libtpu: 0.0.40
codegen_flags: <defaults>
</compile_context>

<pallas_src>
import numpy as np

import jax
import jax.numpy as jnp
from jax.experimental import pallas as pl
from jax.experimental.pallas import tpu as pltpu

IMG_C, IMG_H, IMG_W = 3, 32, 40      # latent_shape [3, 16, 20] <=> 32x40 input
OUT_DIM = 4                          # task_type='3Dpose'


# ----------------------------------------------------------------------------
# Fused kernel: one grid step == TB sublane-stacked images, all VMEM resident.
# ----------------------------------------------------------------------------
def _fused_kernel(x_ref,
                  s1_ref, w1_ref, b1_ref,
                  s2_ref, w2_ref, b2_ref,
                  s3_ref, w3_ref, b3_ref,
                  rsum_ref, pm_ref, mb1_ref, m2_ref, mb2_ref,
                  out_ref):
    def conv(x_bf, s_ref, w_ref, b_ref, relu):
        # x_bf : (TB*Hi, Wi*Cin) bf16, rows (img, h), lanes (w, cin)
        # out  : (TB*Ho, Wo*Cout) f32, rows (img, ho), lanes (wo, cout)
        rows = s_ref.shape[0] // 3                          # = TB*Ho (static)
        # merged height-tap selection: ONE left matmul for all 3 taps
        t = jnp.dot(s_ref[...], x_bf, preferred_element_type=jnp.float32)
        acc = None
        for i in range(3):                                  # static unroll
            p = jnp.dot(t[i * rows:(i + 1) * rows].astype(jnp.bfloat16),
                        w_ref[i], preferred_element_type=jnp.float32)
            acc = p if acc is None else acc + p
        acc = acc + b_ref[...]                              # (1, N) broadcast, f32
        return jnp.maximum(acc, 0.0) if relu else acc

    x = x_ref[...].astype(jnp.bfloat16)                                  # (TB*32, 120)
    h = conv(x, s1_ref, w1_ref, b1_ref, relu=False)                      # (TB*16, 60)  encoder
    h = conv(h.astype(jnp.bfloat16), s2_ref, w2_ref, b2_ref, relu=True)  # (TB*8, 160)
    h = conv(h.astype(jnp.bfloat16), s3_ref, w3_ref, b3_ref, relu=True)  # (TB*4, 160)

    # AdaptiveAvgPool2d(1) + Linear(32->64) folded: per-image block row-sum,
    # then one (160, 64) matmul carrying width-sum, 1/(Ho*Wo) and mlp1.
    pooled = jnp.dot(rsum_ref[...], h.astype(jnp.bfloat16),
                     preferred_element_type=jnp.float32)                 # (TB, 160)
    z = jnp.dot(pooled.astype(jnp.bfloat16), pm_ref[...],
                preferred_element_type=jnp.float32) + mb1_ref[...]
    z = jnp.maximum(z, 0.0)                                              # (TB, 64)
    y = jnp.dot(z.astype(jnp.bfloat16), m2_ref[...],
                preferred_element_type=jnp.float32) + mb2_ref[...]
    out_ref[0] = y                                                       # (TB, 4)


# ----------------------------------------------------------------------------
# One-time weight packing (host-side numpy; NOT in the forward hot path).
# ----------------------------------------------------------------------------
def _pack_conv(w, b, hin, win, tb):
    """Pack a 3x3 / stride-2 / pad-1 conv into (S_merged, W_i, bias) form."""
    w = np.asarray(w, np.float32)
    b = np.asarray(b, np.float32)
    c_out, c_in = w.shape[0], w.shape[1]
    ho, wo = hin // 2, win // 2
    # Right operands: W_i[(wi,cin),(wo,cout)] = w[cout,cin,i,j], j = wi - 2*wo + 1
    # (width stride-2 selection + width zero-padding folded in).
    wpk = np.zeros((3, win * c_in, wo * c_out), np.float32)
    for i in range(3):
        for wi in range(win):
            for woo in range(wo):
                j = wi - 2 * woo + 1
                if 0 <= j < 3:
                    wpk[i, wi * c_in:(wi + 1) * c_in,
                        woo * c_out:(woo + 1) * c_out] = w[:, :, i, j].T
    # Left operand: 3 height taps stacked vertically, block-diagonal over the
    # TB sublane-stacked images.  Row (i, img, ho) selects input row
    # (img, h = 2*ho + i - 1); padding rows / cross-image entries are zero.
    spk = np.zeros((3 * tb * ho, tb * hin), np.float32)
    for i in range(3):
        for bb in range(tb):
            for hoo in range(ho):
                h = 2 * hoo + i - 1
                if 0 <= h < hin:
                    spk[(i * tb + bb) * ho + hoo, bb * hin + h] = 1.0
    bpk = np.tile(b, wo)[None, :]                            # (1, Wo*Cout)
    return (jnp.asarray(spk, jnp.bfloat16),
            jnp.asarray(wpk, jnp.bfloat16),
            jnp.asarray(bpk, jnp.float32))


def init_params(key, tb):
    """Deterministic synthetic params: returns (raw pytorch-layout, packed)."""
    ks = jax.random.split(key, 10)

    def w(k, shape, fan_in):
        return jax.random.normal(k, shape, jnp.float32) * (1.0 / fan_in) ** 0.5

    raw = {
        # TODO(synk): SimpleAE definition not provided; encoder modeled as a
        # single frozen strided conv producing latent_shape [3, 16, 20].
        "enc_w": w(ks[0], (3, 3, 3, 3), 3 * 9),     "enc_b": w(ks[1], (3,), 1.0),
        "cp1_w": w(ks[2], (16, 3, 3, 3), 3 * 9),    "cp1_b": w(ks[3], (16,), 1.0),
        "cp2_w": w(ks[4], (32, 16, 3, 3), 16 * 9),  "cp2_b": w(ks[5], (32,), 1.0),
        # TODO(synk): MlpHead definition not provided; modeled as 32->64->4.
        "mlp1_w": w(ks[6], (64, 32), 32),           "mlp1_b": w(ks[7], (64,), 1.0),
        "mlp2_w": w(ks[8], (4, 64), 64),            "mlp2_b": w(ks[9], (4,), 1.0),
    }

    s1, w1, b1 = _pack_conv(raw["enc_w"], raw["enc_b"], IMG_H, IMG_W, tb)           # 32x40 -> 16x20
    s2, w2, b2 = _pack_conv(raw["cp1_w"], raw["cp1_b"], IMG_H // 2, IMG_W // 2, tb)  # 16x20 -> 8x10
    s3, w3, b3 = _pack_conv(raw["cp2_w"], raw["cp2_b"], IMG_H // 4, IMG_W // 4, tb)  # 8x10  -> 4x5

    ho3, wo3 = IMG_H // 8, IMG_W // 8                        # 4, 5 ; channels 32
    # Per-image block row-sum: (TB, TB*Ho3), block-diagonal ones.
    rsum = np.zeros((tb, tb * ho3), np.float32)
    for bb in range(tb):
        rsum[bb, bb * ho3:(bb + 1) * ho3] = 1.0
    # AdaptiveAvgPool (width-group sum + 1/(Ho*Wo)) pre-multiplied with mlp1.
    m1 = np.asarray(raw["mlp1_w"], np.float32)               # (64, 32)
    pm = np.tile(m1.T / float(ho3 * wo3), (wo3, 1))          # (160, 64)

    packed = (
        s1, w1, b1, s2, w2, b2, s3, w3, b3,
        jnp.asarray(rsum, jnp.bfloat16),
        jnp.asarray(pm, jnp.bfloat16),
        jnp.asarray(np.asarray(raw["mlp1_b"], np.float32)[None, :]),
        jnp.asarray(np.asarray(raw["mlp2_w"], np.float32).T, jnp.bfloat16),
        jnp.asarray(np.asarray(raw["mlp2_b"], np.float32)[None, :]),
    )
    return raw, packed


# ----------------------------------------------------------------------------
# Data-prep layout transform (kept OUT of the per-call hot path).
# ----------------------------------------------------------------------------
def pack_image(image_nchw):
    """NCHW -> rows = (img, h), lanes = (w, c); done once at data-prep time."""
    B, C, H, W = image_nchw.shape
    return jnp.transpose(image_nchw, (0, 2, 3, 1)).reshape(B * H, W * C)


def _const_spec(arr):
    zeros = (0,) * arr.ndim
    return pl.BlockSpec(arr.shape, lambda g, _z=zeros: _z)


# ----------------------------------------------------------------------------
# Forward pass (matches NovqPerception.forward for task_type='3Dpose')
# ----------------------------------------------------------------------------
@jax.jit
def novq_perception_forward(x_packed, packed):
    """x_packed: (B*IMG_H, IMG_W*IMG_C) f32, as produced by pack_image."""
    lanes = x_packed.shape[1]
    batch = x_packed.shape[0] // IMG_H
    tb = packed[9].shape[0]                      # rsum is (TB, TB*Ho3)
    nb = -(-batch // tb)                         # ceil-div -> grid steps
    if nb * tb != batch:                         # rare path: pad batch to TB
        x_packed = jnp.pad(x_packed, ((0, (nb * tb - batch) * IMG_H), (0, 0)))

    in_specs = [pl.BlockSpec((tb * IMG_H, lanes), lambda g: (g, 0))]
    in_specs += [_const_spec(a) for a in packed]

    out = pl.pallas_call(
        _fused_kernel,
        out_shape=jax.ShapeDtypeStruct((nb, tb, OUT_DIM), jnp.float32),
        grid=(nb,),
        in_specs=in_specs,
        out_specs=pl.BlockSpec((1, tb, OUT_DIM), lambda g: (g, 0, 0)),
        compiler_params=pltpu.CompilerParams(
            dimension_semantics=("parallel",)),  # v7x: batch blocks across TCs
    )(x_packed, *packed)
    return out.reshape(nb * tb, OUT_DIM)[:batch]


# ----------------------------------------------------------------------------
# Pure-JAX reference (same synthetic architecture) for a correctness check.
# ----------------------------------------------------------------------------
def reference_forward(image, raw):
    def conv(x, w, b, relu):
        y = jax.lax.conv_general_dilated(
            x, w, window_strides=(2, 2), padding=((1, 1), (1, 1)),
            dimension_numbers=("NCHW", "OIHW", "NCHW"))
        y = y + b[None, :, None, None]
        return jnp.maximum(y, 0.0) if relu else y

    h = conv(image, raw["enc_w"], raw["enc_b"], False)
    h = conv(h, raw["cp1_w"], raw["cp1_b"], True)
    h = conv(h, raw["cp2_w"], raw["cp2_b"], True)
    pooled = jnp.mean(h, axis=(2, 3))
    z = jnp.maximum(pooled @ raw["mlp1_w"].T + raw["mlp1_b"], 0.0)
    return z @ raw["mlp2_w"].T + raw["mlp2_b"]


# ----------------------------------------------------------------------------
if __name__ == "__main__":
    key = jax.random.PRNGKey(0)
    k_img, k_par = jax.random.split(key)

    BATCH = 2
    TB = 2      # images per grid step; use 4 (v5e) / 8 (v6e, v7x) for full MXU rows
    image = jax.random.normal(k_img, (BATCH, IMG_C, IMG_H, IMG_W), jnp.float32)
    raw, packed = init_params(k_par, tb=TB)

    x_packed = pack_image(image)                 # one-time data-prep layout
    out = novq_perception_forward(x_packed, packed)
    jax.block_until_ready(out)
    assert out.shape == (BATCH, OUT_DIM), out.shape

    ref = reference_forward(image, raw)
    if not bool(jnp.allclose(out, ref, atol=2e-2, rtol=2e-2)):
        raise AssertionError(
            f"kernel/reference mismatch, max |err| = "
            f"{float(jnp.max(jnp.abs(out - ref)))}")
    print("KERNEL_OK")
</pallas_src>

<mosaic_0001>
module attributes {stable_mosaic.version = 11 : i64} {
  func.func @_fused_kernel(%arg0: i32, %arg1: memref<64x120xf32, #tpu.memory_space<vmem>>, %arg2: memref<96x64xbf16, #tpu.memory_space<vmem>>, %arg3: memref<3x120x60xbf16, #tpu.memory_space<vmem>>, %arg4: memref<1x60xf32, #tpu.memory_space<vmem>>, %arg5: memref<48x32xbf16, #tpu.memory_space<vmem>>, %arg6: memref<3x60x160xbf16, #tpu.memory_space<vmem>>, %arg7: memref<1x160xf32, #tpu.memory_space<vmem>>, %arg8: memref<24x16xbf16, #tpu.memory_space<vmem>>, %arg9: memref<3x160x160xbf16, #tpu.memory_space<vmem>>, %arg10: memref<1x160xf32, #tpu.memory_space<vmem>>, %arg11: memref<2x8xbf16, #tpu.memory_space<vmem>>, %arg12: memref<160x64xbf16, #tpu.memory_space<vmem>>, %arg13: memref<1x64xf32, #tpu.memory_space<vmem>>, %arg14: memref<64x4xbf16, #tpu.memory_space<vmem>>, %arg15: memref<1x4xf32, #tpu.memory_space<vmem>>, %arg16: memref<1x2x4xf32, #tpu.memory_space<vmem>>) attributes {dimension_semantics = [#tpu.dimension_semantics<parallel>], iteration_bounds = array<i64: 1>, scalar_prefetch = 0 : i64, scratch_operands = 0 : i64, tpu.core_type = #tpu.core_type<tc>, window_params = [{transform_indices = @transform_0, window_bounds = array<i64: 64, 120>}, {pipeline_mode = #tpu.pipeline_mode<synchronous>, transform_indices = @transform_1, window_bounds = array<i64: 96, 64>}, {pipeline_mode = #tpu.pipeline_mode<synchronous>, transform_indices = @transform_2, window_bounds = array<i64: 3, 120, 60>}, {pipeline_mode = #tpu.pipeline_mode<synchronous>, transform_indices = @transform_3, window_bounds = array<i64: 1, 60>}, {pipeline_mode = #tpu.pipeline_mode<synchronous>, transform_indices = @transform_4, window_bounds = array<i64: 48, 32>}, {pipeline_mode = #tpu.pipeline_mode<synchronous>, transform_indices = @transform_5, window_bounds = array<i64: 3, 60, 160>}, {pipeline_mode = #tpu.pipeline_mode<synchronous>, transform_indices = @transform_6, window_bounds = array<i64: 1, 160>}, {pipeline_mode = #tpu.pipeline_mode<synchronous>, transform_indices = @transform_7, window_bounds = array<i64: 24, 16>}, {pipeline_mode = #tpu.pipeline_mode<synchronous>, transform_indices = @transform_8, window_bounds = array<i64: 3, 160, 160>}, {pipeline_mode = #tpu.pipeline_mode<synchronous>, transform_indices = @transform_9, window_bounds = array<i64: 1, 160>}, {pipeline_mode = #tpu.pipeline_mode<synchronous>, transform_indices = @transform_10, window_bounds = array<i64: 2, 8>}, {pipeline_mode = #tpu.pipeline_mode<synchronous>, transform_indices = @transform_11, window_bounds = array<i64: 160, 64>}, {pipeline_mode = #tpu.pipeline_mode<synchronous>, transform_indices = @transform_12, window_bounds = array<i64: 1, 64>}, {pipeline_mode = #tpu.pipeline_mode<synchronous>, transform_indices = @transform_13, window_bounds = array<i64: 64, 4>}, {pipeline_mode = #tpu.pipeline_mode<synchronous>, transform_indices = @transform_14, window_bounds = array<i64: 1, 4>}, {transform_indices = @transform_15, window_bounds = array<i64: 1, 2, 4>}]} {
    %c0 = arith.constant 0 : index
    %c0_0 = arith.constant 0 : index
    %0 = vector.load %arg1[%c0, %c0_0] : memref<64x120xf32, #tpu.memory_space<vmem>>, vector<64x120xf32>
    %1 = arith.truncf %0 : vector<64x120xf32> to vector<64x120xbf16>
    %c0_1 = arith.constant 0 : index
    %c0_2 = arith.constant 0 : index
    %2 = vector.load %arg2[%c0_1, %c0_2] : memref<96x64xbf16, #tpu.memory_space<vmem>>, vector<96x64xbf16>
    %cst = arith.constant dense<0.000000e+00> : vector<96x120xf32>
    %3 = tpu.matmul %2, %1, %cst {dimension_numbers = #tpu.dot_dimension_numbers<[1], [0], [0], [1], [0, 0, 1, 1], [], []>} : vector<96x64xbf16>, vector<64x120xbf16>, vector<96x120xf32> -> vector<96x120xf32>
    %4 = vector.extract_strided_slice %3 {offsets = [0, 0], sizes = [32, 120], strides = [1, 1]} : vector<96x120xf32> to vector<32x120xf32>
    %5 = arith.truncf %4 : vector<32x120xf32> to vector<32x120xbf16>
    %c0_3 = arith.constant 0 : index
    %c0_4 = arith.constant 0 : index
    %c0_5 = arith.constant 0 : index
    %6 = vector.load %arg3[%c0_3, %c0_4, %c0_5] : memref<3x120x60xbf16, #tpu.memory_space<vmem>>, vector<1x120x60xbf16>
    %7 = vector.shape_cast %6 : vector<1x120x60xbf16> to vector<120x60xbf16>
    %cst_6 = arith.constant dense<0.000000e+00> : vector<32x60xf32>
    %8 = tpu.matmul %5, %7, %cst_6 {dimension_numbers = #tpu.dot_dimension_numbers<[1], [0], [0], [1], [0, 0, 1, 1], [], []>} : vector<32x120xbf16>, vector<120x60xbf16>, vector<32x60xf32> -> vector<32x60xf32>
    %9 = vector.extract_strided_slice %3 {offsets = [32, 0], sizes = [32, 120], strides = [1, 1]} : vector<96x120xf32> to vector<32x120xf32>
    %10 = arith.truncf %9 : vector<32x120xf32> to vector<32x120xbf16>
    %c1 = arith.constant 1 : index
    %c0_7 = arith.constant 0 : index
    %c0_8 = arith.constant 0 : index
    %11 = vector.load %arg3[%c1, %c0_7, %c0_8] : memref<3x120x60xbf16, #tpu.memory_space<vmem>>, vector<1x120x60xbf16>
    %12 = vector.shape_cast %11 : vector<1x120x60xbf16> to vector<120x60xbf16>
    %cst_9 = arith.constant dense<0.000000e+00> : vector<32x60xf32>
    %13 = tpu.matmul %10, %12, %cst_9 {dimension_numbers = #tpu.dot_dimension_numbers<[1], [0], [0], [1], [0, 0, 1, 1], [], []>} : vector<32x120xbf16>, vector<120x60xbf16>, vector<32x60xf32> -> vector<32x60xf32>
    %14 = arith.addf %8, %13 : vector<32x60xf32>
    %15 = vector.extract_strided_slice %3 {offsets = [64, 0], sizes = [32, 120], strides = [1, 1]} : vector<96x120xf32> to vector<32x120xf32>
    %16 = arith.truncf %15 : vector<32x120xf32> to vector<32x120xbf16>
    %c2 = arith.constant 2 : index
    %c0_10 = arith.constant 0 : index
    %c0_11 = arith.constant 0 : index
    %17 = vector.load %arg3[%c2, %c0_10, %c0_11] : memref<3x120x60xbf16, #tpu.memory_space<vmem>>, vector<1x120x60xbf16>
    %18 = vector.shape_cast %17 : vector<1x120x60xbf16> to vector<120x60xbf16>
    %cst_12 = arith.constant dense<0.000000e+00> : vector<32x60xf32>
    %19 = tpu.matmul %16, %18, %cst_12 {dimension_numbers = #tpu.dot_dimension_numbers<[1], [0], [0], [1], [0, 0, 1, 1], [], []>} : vector<32x120xbf16>, vector<120x60xbf16>, vector<32x60xf32> -> vector<32x60xf32>
    %20 = arith.addf %14, %19 : vector<32x60xf32>
    %c0_13 = arith.constant 0 : index
    %c0_14 = arith.constant 0 : index
    %21 = vector.load %arg4[%c0_13, %c0_14] : memref<1x60xf32, #tpu.memory_space<vmem>>, vector<1x60xf32>
    %22 = vector.broadcast %21 : vector<1x60xf32> to vector<32x60xf32>
    %23 = arith.addf %20, %22 : vector<32x60xf32>
    %24 = arith.truncf %23 : vector<32x60xf32> to vector<32x60xbf16>
    %c0_15 = arith.constant 0 : index
    %c0_16 = arith.constant 0 : index
    %25 = vector.load %arg5[%c0_15, %c0_16] : memref<48x32xbf16, #tpu.memory_space<vmem>>, vector<48x32xbf16>
    %cst_17 = arith.constant dense<0.000000e+00> : vector<48x60xf32>
    %26 = tpu.matmul %25, %24, %cst_17 {dimension_numbers = #tpu.dot_dimension_numbers<[1], [0], [0], [1], [0, 0, 1, 1], [], []>} : vector<48x32xbf16>, vector<32x60xbf16>, vector<48x60xf32> -> vector<48x60xf32>
    %27 = vector.extract_strided_slice %26 {offsets = [0, 0], sizes = [16, 60], strides = [1, 1]} : vector<48x60xf32> to vector<16x60xf32>
    %28 = arith.truncf %27 : vector<16x60xf32> to vector<16x60xbf16>
    %c0_18 = arith.constant 0 : index
    %c0_19 = arith.constant 0 : index
    %c0_20 = arith.constant 0 : index
    %29 = vector.load %arg6[%c0_18, %c0_19, %c0_20] : memref<3x60x160xbf16, #tpu.memory_space<vmem>>, vector<1x60x160xbf16>
    %30 = vector.shape_cast %29 : vector<1x60x160xbf16> to vector<60x160xbf16>
    %cst_21 = arith.constant dense<0.000000e+00> : vector<16x160xf32>
    %31 = tpu.matmul %28, %30, %cst_21 {dimension_numbers = #tpu.dot_dimension_numbers<[1], [0], [0], [1], [0, 0, 1, 1], [], []>} : vector<16x60xbf16>, vector<60x160xbf16>, vector<16x160xf32> -> vector<16x160xf32>
    %32 = vector.extract_strided_slice %26 {offsets = [16, 0], sizes = [16, 60], strides = [1, 1]} : vector<48x60xf32> to vector<16x60xf32>
    %33 = arith.truncf %32 : vector<16x60xf32> to vector<16x60xbf16>
    %c1_22 = arith.constant 1 : index
    %c0_23 = arith.constant 0 : index
    %c0_24 = arith.constant 0 : index
    %34 = vector.load %arg6[%c1_22, %c0_23, %c0_24] : memref<3x60x160xbf16, #tpu.memory_space<vmem>>, vector<1x60x160xbf16>
    %35 = vector.shape_cast %34 : vector<1x60x160xbf16> to vector<60x160xbf16>
    %cst_25 = arith.constant dense<0.000000e+00> : vector<16x160xf32>
    %36 = tpu.matmul %33, %35, %cst_25 {dimension_numbers = #tpu.dot_dimension_numbers<[1], [0], [0], [1], [0, 0, 1, 1], [], []>} : vector<16x60xbf16>, vector<60x160xbf16>, vector<16x160xf32> -> vector<16x160xf32>
    %37 = arith.addf %31, %36 : vector<16x160xf32>
    %38 = vector.extract_strided_slice %26 {offsets = [32, 0], sizes = [16, 60], strides = [1, 1]} : vector<48x60xf32> to vector<16x60xf32>
    %39 = arith.truncf %38 : vector<16x60xf32> to vector<16x60xbf16>
    %c2_26 = arith.constant 2 : index
    %c0_27 = arith.constant 0 : index
    %c0_28 = arith.constant 0 : index
    %40 = vector.load %arg6[%c2_26, %c0_27, %c0_28] : memref<3x60x160xbf16, #tpu.memory_space<vmem>>, vector<1x60x160xbf16>
    %41 = vector.shape_cast %40 : vector<1x60x160xbf16> to vector<60x160xbf16>
    %cst_29 = arith.constant dense<0.000000e+00> : vector<16x160xf32>
    %42 = tpu.matmul %39, %41, %cst_29 {dimension_numbers = #tpu.dot_dimension_numbers<[1], [0], [0], [1], [0, 0, 1, 1], [], []>} : vector<16x60xbf16>, vector<60x160xbf16>, vector<16x160xf32> -> vector<16x160xf32>
    %43 = arith.addf %37, %42 : vector<16x160xf32>
    %c0_30 = arith.constant 0 : index
    %c0_31 = arith.constant 0 : index
    %44 = vector.load %arg7[%c0_30, %c0_31] : memref<1x160xf32, #tpu.memory_space<vmem>>, vector<1x160xf32>
    %45 = vector.broadcast %44 : vector<1x160xf32> to vector<16x160xf32>
    %46 = arith.addf %43, %45 : vector<16x160xf32>
    %cst_32 = arith.constant 0.000000e+00 : f32
    %47 = vector.broadcast %cst_32 : f32 to vector<16x160xf32>
    %48 = arith.maximumf %46, %47 : vector<16x160xf32>
    %49 = arith.truncf %48 : vector<16x160xf32> to vector<16x160xbf16>
    %c0_33 = arith.constant 0 : index
    %c0_34 = arith.constant 0 : index
    %50 = vector.load %arg8[%c0_33, %c0_34] : memref<24x16xbf16, #tpu.memory_space<vmem>>, vector<24x16xbf16>
    %cst_35 = arith.constant dense<0.000000e+00> : vector<24x160xf32>
    %51 = tpu.matmul %50, %49, %cst_35 {dimension_numbers = #tpu.dot_dimension_numbers<[1], [0], [0], [1], [0, 0, 1, 1], [], []>} : vector<24x16xbf16>, vector<16x160xbf16>, vector<24x160xf32> -> vector<24x160xf32>
    %52 = vector.extract_strided_slice %51 {offsets = [0, 0], sizes = [8, 160], strides = [1, 1]} : vector<24x160xf32> to vector<8x160xf32>
    %53 = arith.truncf %52 : vector<8x160xf32> to vector<8x160xbf16>
    %c0_36 = arith.constant 0 : index
    %c0_37 = arith.constant 0 : index
    %c0_38 = arith.constant 0 : index
    %54 = vector.load %arg9[%c0_36, %c0_37, %c0_38] : memref<3x160x160xbf16, #tpu.memory_space<vmem>>, vector<1x160x160xbf16>
    %55 = vector.shape_cast %54 : vector<1x160x160xbf16> to vector<160x160xbf16>
    %cst_39 = arith.constant dense<0.000000e+00> : vector<8x160xf32>
    %56 = tpu.matmul %53, %55, %cst_39 {dimension_numbers = #tpu.dot_dimension_numbers<[1], [0], [0], [1], [0, 0, 1, 1], [], []>} : vector<8x160xbf16>, vector<160x160xbf16>, vector<8x160xf32> -> vector<8x160xf32>
    %57 = vector.extract_strided_slice %51 {offsets = [8, 0], sizes = [8, 160], strides = [1, 1]} : vector<24x160xf32> to vector<8x160xf32>
    %58 = arith.truncf %57 : vector<8x160xf32> to vector<8x160xbf16>
    %c1_40 = arith.constant 1 : index
    %c0_41 = arith.constant 0 : index
    %c0_42 = arith.constant 0 : index
    %59 = vector.load %arg9[%c1_40, %c0_41, %c0_42] : memref<3x160x160xbf16, #tpu.memory_space<vmem>>, vector<1x160x160xbf16>
    %60 = vector.shape_cast %59 : vector<1x160x160xbf16> to vector<160x160xbf16>
    %cst_43 = arith.constant dense<0.000000e+00> : vector<8x160xf32>
    %61 = tpu.matmul %58, %60, %cst_43 {dimension_numbers = #tpu.dot_dimension_numbers<[1], [0], [0], [1], [0, 0, 1, 1], [], []>} : vector<8x160xbf16>, vector<160x160xbf16>, vector<8x160xf32> -> vector<8x160xf32>
    %62 = arith.addf %56, %61 : vector<8x160xf32>
    %63 = vector.extract_strided_slice %51 {offsets = [16, 0], sizes = [8, 160], strides = [1, 1]} : vector<24x160xf32> to vector<8x160xf32>
    %64 = arith.truncf %63 : vector<8x160xf32> to vector<8x160xbf16>
    %c2_44 = arith.constant 2 : index
    %c0_45 = arith.constant 0 : index
    %c0_46 = arith.constant 0 : index
    %65 = vector.load %arg9[%c2_44, %c0_45, %c0_46] : memref<3x160x160xbf16, #tpu.memory_space<vmem>>, vector<1x160x160xbf16>
    %66 = vector.shape_cast %65 : vector<1x160x160xbf16> to vector<160x160xbf16>
    %cst_47 = arith.constant dense<0.000000e+00> : vector<8x160xf32>
    %67 = tpu.matmul %64, %66, %cst_47 {dimension_numbers = #tpu.dot_dimension_numbers<[1], [0], [0], [1], [0, 0, 1, 1], [], []>} : vector<8x160xbf16>, vector<160x160xbf16>, vector<8x160xf32> -> vector<8x160xf32>
    %68 = arith.addf %62, %67 : vector<8x160xf32>
    %c0_48 = arith.constant 0 : index
    %c0_49 = arith.constant 0 : index
    %69 = vector.load %arg10[%c0_48, %c0_49] : memref<1x160xf32, #tpu.memory_space<vmem>>, vector<1x160xf32>
    %70 = vector.broadcast %69 : vector<1x160xf32> to vector<8x160xf32>
    %71 = arith.addf %68, %70 : vector<8x160xf32>
    %cst_50 = arith.constant 0.000000e+00 : f32
    %72 = vector.broadcast %cst_50 : f32 to vector<8x160xf32>
    %73 = arith.maximumf %71, %72 : vector<8x160xf32>
    %c0_51 = arith.constant 0 : index
    %c0_52 = arith.constant 0 : index
    %74 = vector.load %arg11[%c0_51, %c0_52] : memref<2x8xbf16, #tpu.memory_space<vmem>>, vector<2x8xbf16>
    %75 = arith.truncf %73 : vector<8x160xf32> to vector<8x160xbf16>
    %cst_53 = arith.constant dense<0.000000e+00> : vector<2x160xf32>
    %76 = tpu.matmul %74, %75, %cst_53 {dimension_numbers = #tpu.dot_dimension_numbers<[1], [0], [0], [1], [0, 0, 1, 1], [], []>} : vector<2x8xbf16>, vector<8x160xbf16>, vector<2x160xf32> -> vector<2x160xf32>
    %77 = arith.truncf %76 : vector<2x160xf32> to vector<2x160xbf16>
    %c0_54 = arith.constant 0 : index
    %c0_55 = arith.constant 0 : index
    %78 = vector.load %arg12[%c0_54, %c0_55] : memref<160x64xbf16, #tpu.memory_space<vmem>>, vector<160x64xbf16>
    %cst_56 = arith.constant dense<0.000000e+00> : vector<2x64xf32>
    %79 = tpu.matmul %77, %78, %cst_56 {dimension_numbers = #tpu.dot_dimension_numbers<[1], [0], [0], [1], [0, 0, 1, 1], [], []>} : vector<2x160xbf16>, vector<160x64xbf16>, vector<2x64xf32> -> vector<2x64xf32>
    %c0_57 = arith.constant 0 : index
    %c0_58 = arith.constant 0 : index
    %80 = vector.load %arg13[%c0_57, %c0_58] : memref<1x64xf32, #tpu.memory_space<vmem>>, vector<1x64xf32>
    %81 = vector.broadcast %80 : vector<1x64xf32> to vector<2x64xf32>
    %82 = arith.addf %79, %81 : vector<2x64xf32>
    %cst_59 = arith.constant 0.000000e+00 : f32
    %83 = vector.broadcast %cst_59 : f32 to vector<2x64xf32>
    %84 = arith.maximumf %82, %83 : vector<2x64xf32>
    %85 = arith.truncf %84 : vector<2x64xf32> to vector<2x64xbf16>
    %c0_60 = arith.constant 0 : index
    %c0_61 = arith.constant 0 : index
    %86 = vector.load %arg14[%c0_60, %c0_61] : memref<64x4xbf16, #tpu.memory_space<vmem>>, vector<64x4xbf16>
    %cst_62 = arith.constant dense<0.000000e+00> : vector<2x4xf32>
    %87 = tpu.matmul %85, %86, %cst_62 {dimension_numbers = #tpu.dot_dimension_numbers<[1], [0], [0], [1], [0, 0, 1, 1], [], []>} : vector<2x64xbf16>, vector<64x4xbf16>, vector<2x4xf32> -> vector<2x4xf32>
    %c0_63 = arith.constant 0 : index
    %c0_64 = arith.constant 0 : index
    %88 = vector.load %arg15[%c0_63, %c0_64] : memref<1x4xf32, #tpu.memory_space<vmem>>, vector<1x4xf32>
    %89 = vector.broadcast %88 : vector<1x4xf32> to vector<2x4xf32>
    %90 = arith.addf %87, %89 : vector<2x4xf32>
    %c0_65 = arith.constant 0 : index
    %c0_66 = arith.constant 0 : index
    %c0_67 = arith.constant 0 : index
    %91 = vector.load %arg16[%c0_65, %c0_66, %c0_67] : memref<1x2x4xf32, #tpu.memory_space<vmem>>, vector<1x2x4xf32>
    %92 = vector.shape_cast %91 : vector<1x2x4xf32> to vector<2x4xf32>
    %93 = vector.shape_cast %90 : vector<2x4xf32> to vector<1x2x4xf32>
    tpu.vector_store %arg16[%c0_65, %c0_66, %c0_67], %93 {strides = array<i32>} : memref<1x2x4xf32, #tpu.memory_space<vmem>>, vector<1x2x4xf32>,
    return
  }
  func.func @transform_0(%arg0: i32) -> (i32, i32) {
    %c0_i32 = arith.constant 0 : i32
    %c0_i32_0 = arith.constant 0 : i32
    return %arg0, %c0_i32 : i32, i32
  }
  func.func @transform_1(%arg0: i32) -> (i32, i32) {
    %c0_i32 = arith.constant 0 : i32
    %c0_i32_0 = arith.constant 0 : i32
    %c0_i32_1 = arith.constant 0 : i32
    return %c0_i32, %c0_i32_0 : i32, i32
  }
  func.func @transform_2(%arg0: i32) -> (i32, i32, i32) {
    %c0_i32 = arith.constant 0 : i32
    %c0_i32_0 = arith.constant 0 : i32
    %c0_i32_1 = arith.constant 0 : i32
    %c0_i32_2 = arith.constant 0 : i32
    return %c0_i32, %c0_i32_0, %c0_i32_1 : i32, i32, i32
  }
  func.func @transform_3(%arg0: i32) -> (i32, i32) {
    %c0_i32 = arith.constant 0 : i32
    %c0_i32_0 = arith.constant 0 : i32
    %c0_i32_1 = arith.constant 0 : i32
    return %c0_i32, %c0_i32_0 : i32, i32
  }
  func.func @transform_4(%arg0: i32) -> (i32, i32) {
    %c0_i32 = arith.constant 0 : i32
    %c0_i32_0 = arith.constant 0 : i32
    %c0_i32_1 = arith.constant 0 : i32
    return %c0_i32, %c0_i32_0 : i32, i32
  }
  func.func @transform_5(%arg0: i32) -> (i32, i32, i32) {
    %c0_i32 = arith.constant 0 : i32
    %c0_i32_0 = arith.constant 0 : i32
    %c0_i32_1 = arith.constant 0 : i32
    %c0_i32_2 = arith.constant 0 : i32
    return %c0_i32, %c0_i32_0, %c0_i32_1 : i32, i32, i32
  }
  func.func @transform_6(%arg0: i32) -> (i32, i32) {
    %c0_i32 = arith.constant 0 : i32
    %c0_i32_0 = arith.constant 0 : i32
    %c0_i32_1 = arith.constant 0 : i32
    return %c0_i32, %c0_i32_0 : i32, i32
  }
  func.func @transform_7(%arg0: i32) -> (i32, i32) {
    %c0_i32 = arith.constant 0 : i32
    %c0_i32_0 = arith.constant 0 : i32
    %c0_i32_1 = arith.constant 0 : i32
    return %c0_i32, %c0_i32_0 : i32, i32
  }
  func.func @transform_8(%arg0: i32) -> (i32, i32, i32) {
    %c0_i32 = arith.constant 0 : i32
    %c0_i32_0 = arith.constant 0 : i32
    %c0_i32_1 = arith.constant 0 : i32
    %c0_i32_2 = arith.constant 0 : i32
    return %c0_i32, %c0_i32_0, %c0_i32_1 : i32, i32, i32
  }
  func.func @transform_9(%arg0: i32) -> (i32, i32) {
    %c0_i32 = arith.constant 0 : i32
    %c0_i32_0 = arith.constant 0 : i32
    %c0_i32_1 = arith.constant 0 : i32
    return %c0_i32, %c0_i32_0 : i32, i32
  }
  func.func @transform_10(%arg0: i32) -> (i32, i32) {
    %c0_i32 = arith.constant 0 : i32
    %c0_i32_0 = arith.constant 0 : i32
    %c0_i32_1 = arith.constant 0 : i32
    return %c0_i32, %c0_i32_0 : i32, i32
  }
  func.func @transform_11(%arg0: i32) -> (i32, i32) {
    %c0_i32 = arith.constant 0 : i32
    %c0_i32_0 = arith.constant 0 : i32
    %c0_i32_1 = arith.constant 0 : i32
    return %c0_i32, %c0_i32_0 : i32, i32
  }
  func.func @transform_12(%arg0: i32) -> (i32, i32) {
    %c0_i32 = arith.constant 0 : i32
    %c0_i32_0 = arith.constant 0 : i32
    %c0_i32_1 = arith.constant 0 : i32
    return %c0_i32, %c0_i32_0 : i32, i32
  }
  func.func @transform_13(%arg0: i32) -> (i32, i32) {
    %c0_i32 = arith.constant 0 : i32
    %c0_i32_0 = arith.constant 0 : i32
    %c0_i32_1 = arith.constant 0 : i32
    return %c0_i32, %c0_i32_0 : i32, i32
  }
  func.func @transform_14(%arg0: i32) -> (i32, i32) {
    %c0_i32 = arith.constant 0 : i32
    %c0_i32_0 = arith.constant 0 : i32
    %c0_i32_1 = arith.constant 0 : i32
    return %c0_i32, %c0_i32_0 : i32, i32
  }
  func.func @transform_15(%arg0: i32) -> (i32, i32, i32) {
    %c0_i32 = arith.constant 0 : i32
    %c0_i32_0 = arith.constant 0 : i32
    %c0_i32_1 = arith.constant 0 : i32
    return %arg0, %c0_i32, %c0_i32_0 : i32, i32, i32
  }
}

</mosaic_0001>

<llo_original>
// kernel: novq_perception_forward.1
$region0: #{novq_perception_forward.1}
  #allocation0 [shape = 'u32[]', space=smem, size = 0x4, offset = 0x4, fixed_abs, tag = 'smem constant byte address 0x4 - core index']
  #allocation1 [shape = 'u32[72,128]{1,0:T(1,128)}', space=vmem, size = 0x9000, scoped, tag = 'internal scratch']
  %s0 = inlined_call_operand.vmem [shape: f32[64,120], index: 0, kind: input, shape index: {}]
  %s1 = inlined_call_operand.vmem [shape: bf16[96,64], index: 1, kind: input, shape index: {}]
  %s2 = inlined_call_operand.vmem [shape: bf16[3,120,60], index: 2, kind: input, shape index: {}]
  %s3 = inlined_call_operand.vmem [shape: f32[1,60], index: 3, kind: input, shape index: {}]
  %s4 = inlined_call_operand.vmem [shape: bf16[48,32], index: 4, kind: input, shape index: {}]
  %s5 = inlined_call_operand.vmem [shape: bf16[3,60,160], index: 5, kind: input, shape index: {}]
  %s6 = inlined_call_operand.vmem [shape: f32[1,160], index: 6, kind: input, shape index: {}]
  %s7 = inlined_call_operand.vmem [shape: bf16[24,16], index: 7, kind: input, shape index: {}]
  %s8 = inlined_call_operand.hbm [shape: bf16[3,160,160], index: 8, kind: input, shape index: {}]
  %s9 = inlined_call_operand.vmem [shape: f32[1,160], index: 9, kind: input, shape index: {}]
  %s10 = inlined_call_operand.vmem [shape: bf16[2,8], index: 10, kind: input, shape index: {}]
  %s11 = inlined_call_operand.vmem [shape: bf16[160,64], index: 11, kind: input, shape index: {}]
  %s12 = inlined_call_operand.vmem [shape: f32[1,64], index: 12, kind: input, shape index: {}]
  %s13 = inlined_call_operand.vmem [shape: bf16[64,4], index: 13, kind: input, shape index: {}]
  %s14 = inlined_call_operand.vmem [shape: f32[1,4], index: 14, kind: input, shape index: {}]
  %s15 = inlined_call_operand.hbm [shape: f32[1,2,4], index: 15, kind: output, shape index: {}]
  %s16 = sld [smem:[#allocation0]]
  $region74: #{novq_perception_forward.1} parent=0
    _
  %s18 = ssub.s32 1, %s16
  %s19 = scalar_select 0, %s18, %s16
  $region1: #{novq_perception_forward.1} parent=0
    #allocation2 [shape = 'u8[245760]{0}', space=vmem, size = 0x3c000, scoped, tag = 'input window, operand 8, single buffered']
    #allocation3 [shape = 's32[1]{0}', space=sflag, size = 0x4, scoped, tag = 'scoped memory for novq_perception_forward.1']
    #allocation4 [shape = 's32[1]{0}', space=sflag, size = 0x4, scoped, tag = 'scoped memory for novq_perception_forward.1']
    #allocation5 [shape = 'u8[1024]{0}', space=vmem, size = 0x400, scoped, tag = 'output window, operand 0, single buffered']
    %20 = vsyncpa [#allocation3], 0
    %21 = vsyncpa [#allocation4], 0
    // Predicated region
    $region2: #{novq_perception_forward.1} parent=1 // pred_check
      _
    $region3: #{novq_perception_forward.1} parent=1 // pred_check_branch
      %23 = sbr.rel (0) target = $region5
    $region4: #{novq_perception_forward.1} parent=1 // pred_region
      _
    $region5: #{novq_perception_forward.1} parent=1 // pred_fallthru
      _
    // Predicated region
    $region6: #{novq_perception_forward.1} parent=1 // pred_check
      _
    $region7: #{novq_perception_forward.1} parent=1 // pred_check_branch
      %25 = sbr.rel (0) target = $region9
    $region8: #{novq_perception_forward.1} parent=1 // pred_region
      _
    $region9: #{novq_perception_forward.1} parent=1 // pred_fallthru
      _
    // Predicated region
    $region10: #{novq_perception_forward.1} parent=1 // pred_check
      _
    $region11: #{novq_perception_forward.1} parent=1 // pred_check_branch
      %27 = sbr.rel (0) target = $region13
    $region12: #{novq_perception_forward.1} parent=1 // pred_region
      _
    $region13: #{novq_perception_forward.1} parent=1 // pred_fallthru
      _
    // Predicated region
    $region14: #{novq_perception_forward.1} parent=1 // pred_check
      _
    $region15: #{novq_perception_forward.1} parent=1 // pred_check_branch
      %29 = sbr.rel (0) target = $region17
    $region16: #{novq_perception_forward.1} parent=1 // pred_region
      _
    $region17: #{novq_perception_forward.1} parent=1 // pred_fallthru
      _
    // Predicated region
    $region18: #{novq_perception_forward.1} parent=1 // pred_check
      _
    $region19: #{novq_perception_forward.1} parent=1 // pred_check_branch
      %31 = sbr.rel (0) target = $region21
    $region20: #{novq_perception_forward.1} parent=1 // pred_region
      _
    $region21: #{novq_perception_forward.1} parent=1 // pred_fallthru
      _
    // Predicated region
    $region22: #{novq_perception_forward.1} parent=1 // pred_check
      _
    $region23: #{novq_perception_forward.1} parent=1 // pred_check_branch
      %33 = sbr.rel (0) target = $region25
    $region24: #{novq_perception_forward.1} parent=1 // pred_region
      _
    $region25: #{novq_perception_forward.1} parent=1 // pred_fallthru
      _
    // Predicated region
    $region26: #{novq_perception_forward.1} parent=1 // pred_check
      _
    $region27: #{novq_perception_forward.1} parent=1 // pred_check_branch
      %35 = sbr.rel (0) target = $region29
    $region28: #{novq_perception_forward.1} parent=1 // pred_region
      _
    $region29: #{novq_perception_forward.1} parent=1 // pred_fallthru
      _
    // Predicated region
    $region30: #{novq_perception_forward.1} parent=1 // pred_check
      _
    $region31: #{novq_perception_forward.1} parent=1 // pred_check_branch
      %37 = sbr.rel (0) target = $region33
    $region32: #{novq_perception_forward.1} parent=1 // pred_region
      _
    $region33: #{novq_perception_forward.1} parent=1 // pred_fallthru
      _
    // Predicated region
    $region34: #{novq_perception_forward.1} parent=1 // pred_check
      _
    $region35: #{novq_perception_forward.1} parent=1 // pred_check_branch
      %39 = sbr.rel (0) target = $region37
    $region36: #{novq_perception_forward.1} parent=1 // pred_region
      %41 = vsyncadd [#allocation3], 0
      %s42 = sshll.u32 %s8, 4
      %s43 = int_to_ptr.hbm [resolvable:$true] %s42
      %s44 = sshll.u32 [#allocation2], 4
      %s45 = int_to_ptr.vmem [resolvable:$true] %s44
      %50 = dma.hbm_to_vmem [thread:$0]  %s43, 7680, %s45, [#allocation3], 128, 128, 8
    $region37: #{novq_perception_forward.1} parent=1 // pred_fallthru
      _
    // Predicated region
    $region38: #{novq_perception_forward.1} parent=1 // pred_check
      _
    $region39: #{novq_perception_forward.1} parent=1 // pred_check_branch
      %52 = sbr.rel (0) target = $region41
    $region40: #{novq_perception_forward.1} parent=1 // pred_region
      _
    $region41: #{novq_perception_forward.1} parent=1 // pred_fallthru
      _
    // Predicated region
    $region42: #{novq_perception_forward.1} parent=1 // pred_check
      _
    $region43: #{novq_perception_forward.1} parent=1 // pred_check_branch
      %54 = sbr.rel (0) target = $region45
    $region44: #{novq_perception_forward.1} parent=1 // pred_region
      _
    $region45: #{novq_perception_forward.1} parent=1 // pred_fallthru
      _
    // Predicated region
    $region46: #{novq_perception_forward.1} parent=1 // pred_check
      _
    $region47: #{novq_perception_forward.1} parent=1 // pred_check_branch
      %56 = sbr.rel (0) target = $region49
    $region48: #{novq_perception_forward.1} parent=1 // pred_region
      _
    $region49: #{novq_perception_forward.1} parent=1 // pred_fallthru
      _
    // Predicated region
    $region50: #{novq_perception_forward.1} parent=1 // pred_check
      _
    $region51: #{novq_perception_forward.1} parent=1 // pred_check_branch
      %58 = sbr.rel (0) target = $region53
    $region52: #{novq_perception_forward.1} parent=1 // pred_region
      _
    $region53: #{novq_perception_forward.1} parent=1 // pred_fallthru
      _
    // Predicated region
    $region54: #{novq_perception_forward.1} parent=1 // pred_check
      _
    $region55: #{novq_perception_forward.1} parent=1 // pred_check_branch
      %60 = sbr.rel (0) target = $region57
    $region56: #{novq_perception_forward.1} parent=1 // pred_region
      _
    $region57: #{novq_perception_forward.1} parent=1 // pred_fallthru
      _
    // Predicated region
    $region58: #{novq_perception_forward.1} parent=1 // pred_check
      _
    $region59: #{novq_perception_forward.1} parent=1 // pred_check_branch
      %62 = sbr.rel (0) target = $region61
    $region60: #{novq_perception_forward.1} parent=1 // pred_region
      _
    $region61: #{novq_perception_forward.1} parent=1 // pred_fallthru
      _
    // Predicated region
    $region62: #{novq_perception_forward.1} parent=1 // pred_check
      _
    $region63: #{novq_perception_forward.1} parent=1 // pred_check_branch
      %64 = sbr.rel (0) target = $region65
    $region64: #{novq_perception_forward.1} parent=1 // pred_region
      %66 = dma.done [#allocation3], 7680
    $region65: #{novq_perception_forward.1} parent=1 // pred_fallthru
      _
    %v68 = vld [vmem:[%s0] sm:$0xff]
    %v69 = vld [vmem:[%s0 + $0x8] sm:$0xff]
    %v70 = vld [vmem:[%s0 + $0x10] sm:$0xff]
    %v71 = vld [vmem:[%s0 + $0x18] sm:$0xff]
    %v72 = vld [vmem:[%s0 + $0x20] sm:$0xff]
    %v73 = vld [vmem:[%s0 + $0x28] sm:$0xff]
    %v74 = vld [vmem:[%s0 + $0x30] sm:$0xff]
    %v75 = vld [vmem:[%s0 + $0x38] sm:$0xff]
    %v76 = vpack.c.bf16 %v69, %v68
    %v77 = vpack.c.bf16 %v71, %v70
    %v78 = vpack.c.bf16 %v73, %v72
    %v79 = vpack.c.bf16 %v75, %v74
    %v80 = vld [vmem:[%s1] sm:$0xf]
    %v81 = vld [vmem:[%s1 + $0x4] sm:$0xf]
    %v82 = vld [vmem:[%s1 + $0x8] sm:$0xf]
    %v83 = vld [vmem:[%s1 + $0xc] sm:$0xf]
    %v84 = vld [vmem:[%s1 + $0x10] sm:$0xf]
    %v85 = vld [vmem:[%s1 + $0x14] sm:$0xf]
    %v86 = vld [vmem:[%s1 + $0x18] sm:$0xf]
    %v87 = vld [vmem:[%s1 + $0x1c] sm:$0xf]
    %v88 = vld [vmem:[%s1 + $0x20] sm:$0xf]
    %v89 = vld [vmem:[%s1 + $0x24] sm:$0xf]
    %v90 = vld [vmem:[%s1 + $0x28] sm:$0xf]
    %v91 = vld [vmem:[%s1 + $0x2c] sm:$0xf]
    %v104 = vunpack.c.l.b16 %v80
    %v105 = vunpack.c.l.b16 %v81
    %v106 = vunpack.c.l.b16 %v82
    %v107 = vunpack.c.l.b16 %v83
    %v108 = vunpack.c.l.b16 %v84
    %v109 = vunpack.c.l.b16 %v85
    %v110 = vunpack.c.l.b16 %v86
    %v111 = vunpack.c.l.b16 %v87
    %v112 = vunpack.c.l.b16 %v88
    %v113 = vunpack.c.l.b16 %v89
    %v114 = vunpack.c.l.b16 %v90
    %v115 = vunpack.c.l.b16 %v91
    %v116 = vpack.c.b16 %v105, %v104
    %v117 = vpack.c.b16 %v107, %v106
    %v118 = vpack.c.b16 %v109, %v108
    %v119 = vpack.c.b16 %v111, %v110
    %v120 = vpack.c.b16 %v113, %v112
    %v121 = vpack.c.b16 %v115, %v114
    %vm122 = vcmask 523264
    %v124 = vsel %vm122, %v116, 0
    %v127 = vsel %vm122, %v117, 0
    %v130 = vsel %vm122, %v118, 0
    %v133 = vsel %vm122, %v119, 0
    %v136 = vsel %vm122, %v120, 0
    %v139 = vsel %vm122, %v121, 0
    %141 = vmatpush.bf16.msra.mxu0 0
    %142 = vmatpush.bf16.msra.mxu0 0
    %143 = vmatpush.bf16.msra.mxu0 0
    %144 = vmatpush.bf16.msra.mxu0 0
    %145 = vmatpush.bf16.msra.mxu0 %v79
    %146 = vmatpush.bf16.msra.mxu0 %v78
    %147 = vmatpush.bf16.msra.mxu0 %v77
    %148 = vmatpush.bf16.msra.mxu0 %v76
    %149 = vmatmul.bf16.gmra.mxu0 %v124
    %v150 = vpop.f32.mrf.mxu0
    %v151 = vadd.f32 0.0, %v150
    %v152 = vpop.f32.mrf.mxu0
    %v153 = vadd.f32 0.0, %v152
    %154 = vmatmul.bf16.gmra.mxu0 %v127
    %v155 = vpop.f32.mrf.mxu0
    %v156 = vadd.f32 0.0, %v155
    %v157 = vpop.f32.mrf.mxu0
    %v158 = vadd.f32 0.0, %v157
    %159 = vmatmul.bf16.gmra.mxu0 %v130
    %v160 = vpop.f32.mrf.mxu0
    %v161 = vadd.f32 0.0, %v160
    %v162 = vpop.f32.mrf.mxu0
    %v163 = vadd.f32 0.0, %v162
    %164 = vmatmul.bf16.gmra.mxu0 %v133
    %v165 = vpop.f32.mrf.mxu0
    %v166 = vadd.f32 0.0, %v165
    %v167 = vpop.f32.mrf.mxu0
    %v168 = vadd.f32 0.0, %v167
    %169 = vmatmul.bf16.gmra.mxu0 %v136
    %v170 = vpop.f32.mrf.mxu0
    %v171 = vadd.f32 0.0, %v170
    %v172 = vpop.f32.mrf.mxu0
    %v173 = vadd.f32 0.0, %v172
    %174 = vmatmul.bf16.gmra.mxu0 %v139
    %v175 = vpop.f32.mrf.mxu0
    %v176 = vadd.f32 0.0, %v175
    %v177 = vpop.f32.mrf.mxu0
    %v178 = vadd.f32 0.0, %v177
    %179 = vdwg.mxu0
    %v180 = vpack.c.bf16 %v153, %v151
    %v181 = vpack.c.bf16 %v158, %v156
    %v182 = vld [vmem:[%s2] sm:$0xf]
    %v183 = vld [vmem:[%s2 + $0x4] sm:$0xf]
    %v184 = vld [vmem:[%s2 + $0x8] sm:$0xf]
    %v185 = vld [vmem:[%s2 + $0xc] sm:$0xf]
    %v186 = vld [vmem:[%s2 + $0x10] sm:$0xf]
    %v187 = vld [vmem:[%s2 + $0x14] sm:$0xf]
    %v188 = vld [vmem:[%s2 + $0x18] sm:$0xf]
    %v189 = vld [vmem:[%s2 + $0x1c] sm:$0xf]
    %v190 = vld [vmem:[%s2 + $0x20] sm:$0xf]
    %v191 = vld [vmem:[%s2 + $0x24] sm:$0xf]
    %v192 = vld [vmem:[%s2 + $0x28] sm:$0xf]
    %v193 = vld [vmem:[%s2 + $0x2c] sm:$0xf]
    %v194 = vld [vmem:[%s2 + $0x30] sm:$0xf]
    %v195 = vld [vmem:[%s2 + $0x34] sm:$0xf]
    %v196 = vld [vmem:[%s2 + $0x38] sm:$0xf]
    %v197 = vpack.c.bf16 %v163, %v161
    %v198 = vpack.c.bf16 %v168, %v166
    %s199 = scalar_lea.vmem %s2, 60
    %v200 = vld [vmem:[%s199] sm:$0xf]
    %v201 = vld [vmem:[%s199 + $0x4] sm:$0xf]
    %v202 = vld [vmem:[%s199 + $0x8] sm:$0xf]
    %v203 = vld [vmem:[%s199 + $0xc] sm:$0xf]
    %v204 = vld [vmem:[%s199 + $0x10] sm:$0xf]
    %v205 = vld [vmem:[%s199 + $0x14] sm:$0xf]
    %v206 = vld [vmem:[%s199 + $0x18] sm:$0xf]
    %v207 = vld [vmem:[%s199 + $0x1c] sm:$0xf]
    %v208 = vld [vmem:[%s199 + $0x20] sm:$0xf]
    %v209 = vld [vmem:[%s199 + $0x24] sm:$0xf]
    %v210 = vld [vmem:[%s199 + $0x28] sm:$0xf]
    %v211 = vld [vmem:[%s199 + $0x2c] sm:$0xf]
    %v212 = vld [vmem:[%s199 + $0x30] sm:$0xf]
    %v213 = vld [vmem:[%s199 + $0x34] sm:$0xf]
    %v214 = vld [vmem:[%s199 + $0x38] sm:$0xf]
    %v230 = vunpack.c.l.b16 %v200
    %v231 = vunpack.c.l.b16 %v201
    %v232 = vunpack.c.l.b16 %v202
    %v233 = vunpack.c.l.b16 %v203
    %v234 = vunpack.c.l.b16 %v204
    %v235 = vunpack.c.l.b16 %v205
    %v236 = vunpack.c.l.b16 %v206
    %v237 = vunpack.c.l.b16 %v207
    %v238 = vunpack.c.l.b16 %v208
    %v239 = vunpack.c.l.b16 %v209
    %v240 = vunpack.c.l.b16 %v210
    %v241 = vunpack.c.l.b16 %v211
    %v242 = vunpack.c.l.b16 %v212
    %v243 = vunpack.c.l.b16 %v213
    %v244 = vunpack.c.l.b16 %v214
    %v245 = vpack.c.b16 %v231, %v230
    %v246 = vpack.c.b16 %v233, %v232
    %v247 = vpack.c.b16 %v235, %v234
    %v248 = vpack.c.b16 %v237, %v236
    %v249 = vpack.c.b16 %v239, %v238
    %v250 = vpack.c.b16 %v241, %v240
    %v251 = vpack.c.b16 %v243, %v242
    %v252 = vpack.c.b16 %v244, %v244
    %vm260 = vcmask 982016
    %v262 = vsel %vm260, %v197, 0
    %v265 = vsel %vm260, %v198, 0
    %vm267 = vcmask 1043456
    %v269 = vsel %vm267, %v252, 0
    %271 = vmatpush.bf16.msra.mxu0 %v269
    %272 = vmatpush.bf16.msra.mxu0 %v251
    %273 = vmatpush.bf16.msra.mxu0 %v250
    %274 = vmatpush.bf16.msra.mxu0 %v249
    %275 = vmatpush.bf16.msra.mxu0 %v248
    %276 = vmatpush.bf16.msra.mxu0 %v247
    %277 = vmatpush.bf16.msra.mxu0 %v246
    %278 = vmatpush.bf16.msra.mxu0 %v245
    %279 = vmatmul.bf16.gmra.mxu0 %v262
    %v280 = vpop.f32.mrf.mxu0
    %v281 = vadd.f32 0.0, %v280
    %v282 = vpop.f32.mrf.mxu0
    %v283 = vadd.f32 0.0, %v282
    %284 = vmatmul.bf16.gmra.mxu0 %v265
    %v285 = vpop.f32.mrf.mxu0
    %v286 = vadd.f32 0.0, %v285
    %v287 = vpop.f32.mrf.mxu0
    %v288 = vadd.f32 0.0, %v287
    %289 = vdwg.mxu0
    %v305 = vunpack.c.l.b16 %v182
    %v306 = vunpack.c.l.b16 %v183
    %v307 = vunpack.c.l.b16 %v184
    %v308 = vunpack.c.l.b16 %v185
    %v309 = vunpack.c.l.b16 %v186
    %v310 = vunpack.c.l.b16 %v187
    %v311 = vunpack.c.l.b16 %v188
    %v312 = vunpack.c.l.b16 %v189
    %v313 = vunpack.c.l.b16 %v190
    %v314 = vunpack.c.l.b16 %v191
    %v315 = vunpack.c.l.b16 %v192
    %v316 = vunpack.c.l.b16 %v193
    %v317 = vunpack.c.l.b16 %v194
    %v318 = vunpack.c.l.b16 %v195
    %v319 = vunpack.c.l.b16 %v196
    %v320 = vpack.c.b16 %v306, %v305
    %v321 = vpack.c.b16 %v308, %v307
    %v322 = vpack.c.b16 %v310, %v309
    %v323 = vpack.c.b16 %v312, %v311
    %v324 = vpack.c.b16 %v314, %v313
    %v325 = vpack.c.b16 %v316, %v315
    %v326 = vpack.c.b16 %v318, %v317
    %v327 = vpack.c.b16 %v319, %v319
    %v336 = vsel %vm260, %v180, 0
    %v339 = vsel %vm260, %v181, 0
    %v342 = vsel %vm267, %v327, 0
    %344 = vmatpush.bf16.msra.mxu0 %v342
    %345 = vmatpush.bf16.msra.mxu0 %v326
    %346 = vmatpush.bf16.msra.mxu0 %v325
    %347 = vmatpush.bf16.msra.mxu0 %v324
    %348 = vmatpush.bf16.msra.mxu0 %v323
    %349 = vmatpush.bf16.msra.mxu0 %v322
    %350 = vmatpush.bf16.msra.mxu0 %v321
    %351 = vmatpush.bf16.msra.mxu0 %v320
    %352 = vmatmul.bf16.gmra.mxu0 %v336
    %v353 = vpop.f32.mrf.mxu0
    %v354 = vadd.f32 %v281, %v353
    %v355 = vpop.f32.mrf.mxu0
    %v356 = vadd.f32 %v283, %v355
    %357 = vmatmul.bf16.gmra.mxu0 %v339
    %v358 = vpop.f32.mrf.mxu0
    %v359 = vadd.f32 %v286, %v358
    %v360 = vpop.f32.mrf.mxu0
    %v361 = vadd.f32 %v288, %v360
    %362 = vdwg.mxu0
    %v363 = vpack.c.bf16 %v173, %v171
    %v364 = vpack.c.bf16 %v178, %v176
    %s365 = scalar_lea.vmem %s2, 120
    %v366 = vld [vmem:[%s365] sm:$0xf]
    %v367 = vld [vmem:[%s365 + $0x4] sm:$0xf]
    %v368 = vld [vmem:[%s365 + $0x8] sm:$0xf]
    %v369 = vld [vmem:[%s365 + $0xc] sm:$0xf]
    %v370 = vld [vmem:[%s365 + $0x10] sm:$0xf]
    %v371 = vld [vmem:[%s365 + $0x14] sm:$0xf]
    %v372 = vld [vmem:[%s365 + $0x18] sm:$0xf]
    %v373 = vld [vmem:[%s365 + $0x1c] sm:$0xf]
    %v374 = vld [vmem:[%s365 + $0x20] sm:$0xf]
    %v375 = vld [vmem:[%s365 + $0x24] sm:$0xf]
    %v376 = vld [vmem:[%s365 + $0x28] sm:$0xf]
    %v377 = vld [vmem:[%s365 + $0x2c] sm:$0xf]
    %v378 = vld [vmem:[%s365 + $0x30] sm:$0xf]
    %v379 = vld [vmem:[%s365 + $0x34] sm:$0xf]
    %v380 = vld [vmem:[%s365 + $0x38] sm:$0xf]
    %v396 = vunpack.c.l.b16 %v366
    %v397 = vunpack.c.l.b16 %v367
    %v398 = vunpack.c.l.b16 %v368
    %v399 = vunpack.c.l.b16 %v369
    %v400 = vunpack.c.l.b16 %v370
    %v401 = vunpack.c.l.b16 %v371
    %v402 = vunpack.c.l.b16 %v372
    %v403 = vunpack.c.l.b16 %v373
    %v404 = vunpack.c.l.b16 %v374
    %v405 = vunpack.c.l.b16 %v375
    %v406 = vunpack.c.l.b16 %v376
    %v407 = vunpack.c.l.b16 %v377
    %v408 = vunpack.c.l.b16 %v378
    %v409 = vunpack.c.l.b16 %v379
    %v410 = vunpack.c.l.b16 %v380
    %v411 = vpack.c.b16 %v397, %v396
    %v412 = vpack.c.b16 %v399, %v398
    %v413 = vpack.c.b16 %v401, %v400
    %v414 = vpack.c.b16 %v403, %v402
    %v415 = vpack.c.b16 %v405, %v404
    %v416 = vpack.c.b16 %v407, %v406
    %v417 = vpack.c.b16 %v409, %v408
    %v418 = vpack.c.b16 %v410, %v410
    %v427 = vsel %vm260, %v363, 0
    %v430 = vsel %vm260, %v364, 0
    %v433 = vsel %vm267, %v418, 0
    %435 = vmatpush.bf16.msra.mxu0 %v433
    %436 = vmatpush.bf16.msra.mxu0 %v417
    %437 = vmatpush.bf16.msra.mxu0 %v416
    %438 = vmatpush.bf16.msra.mxu0 %v415
    %439 = vmatpush.bf16.msra.mxu0 %v414
    %440 = vmatpush.bf16.msra.mxu0 %v413
    %441 = vmatpush.bf16.msra.mxu0 %v412
    %442 = vmatpush.bf16.msra.mxu0 %v411
    %443 = vmatmul.bf16.gmra.mxu0 %v427
    %v444 = vpop.f32.mrf.mxu0
    %v445 = vadd.f32 0.0, %v444
    %v446 = vpop.f32.mrf.mxu0
    %v447 = vadd.f32 0.0, %v446
    %448 = vmatmul.bf16.gmra.mxu0 %v430
    %v449 = vpop.f32.mrf.mxu0
    %v450 = vadd.f32 0.0, %v449
    %v451 = vpop.f32.mrf.mxu0
    %v452 = vadd.f32 0.0, %v451
    %453 = vdwg.mxu0
    %v454 = vadd.f32 %v354, %v445
    %v455 = vadd.f32 %v356, %v447
    %v456 = vadd.f32 %v359, %v450
    %v457 = vadd.f32 %v361, %v452
    %v458 = vld [vmem:[%s3] sm:$0x1]
    %v460 = vperm.slane %v458, 0
    %v462 = vadd.f32 %v454, %v460
    %v463 = vadd.f32 %v455, %v460
    %v464 = vadd.f32 %v456, %v460
    %v465 = vadd.f32 %v457, %v460
    %v466 = vpack.c.bf16 %v463, %v462
    %v467 = vpack.c.bf16 %v465, %v464
    %v468 = vld [vmem:[%s4] sm:$0xf]
    %v469 = vld [vmem:[%s4 + $0x4] sm:$0xf]
    %v470 = vld [vmem:[%s4 + $0x8] sm:$0xf]
    %v471 = vld [vmem:[%s4 + $0xc] sm:$0xf]
    %v472 = vld [vmem:[%s4 + $0x10] sm:$0xf]
    %v473 = vld [vmem:[%s4 + $0x14] sm:$0xf]
    %v480 = vunpack.c.l.b16 %v468
    %v481 = vunpack.c.l.b16 %v469
    %v482 = vunpack.c.l.b16 %v470
    %v483 = vunpack.c.l.b16 %v471
    %v484 = vunpack.c.l.b16 %v472
    %v485 = vunpack.c.l.b16 %v473
    %v486 = vpack.c.b16 %v481, %v480
    %v487 = vpack.c.b16 %v483, %v482
    %v488 = vpack.c.b16 %v485, %v484
    %vm489 = vcmask 261120
    %v491 = vsel %vm489, %v486, 0
    %v494 = vsel %vm489, %v487, 0
    %v497 = vsel %vm489, %v488, 0
    %499 = vmatpush.bf16.msra.mxu0 0
    %500 = vmatpush.bf16.msra.mxu0 0
    %501 = vmatpush.bf16.msra.mxu0 0
    %502 = vmatpush.bf16.msra.mxu0 0
    %503 = vmatpush.bf16.msra.mxu0 0
    %504 = vmatpush.bf16.msra.mxu0 0
    %505 = vmatpush.bf16.msra.mxu0 %v467
    %506 = vmatpush.bf16.msra.mxu0 %v466
    %507 = vmatmul.bf16.gmra.mxu0 %v491
    %v508 = vpop.f32.mrf.mxu0
    %v509 = vadd.f32 0.0, %v508
    %v510 = vpop.f32.mrf.mxu0
    %v511 = vadd.f32 0.0, %v510
    %512 = vmatmul.bf16.gmra.mxu0 %v494
    %v513 = vpop.f32.mrf.mxu0
    %v514 = vadd.f32 0.0, %v513
    %v515 = vpop.f32.mrf.mxu0
    %v516 = vadd.f32 0.0, %v515
    %517 = vmatmul.bf16.gmra.mxu0 %v497
    %v518 = vpop.f32.mrf.mxu0
    %v519 = vadd.f32 0.0, %v518
    %v520 = vpop.f32.mrf.mxu0
    %v521 = vadd.f32 0.0, %v520
    %522 = vdwg.mxu0
    %v523 = vpack.c.bf16 %v511, %v509
    %v524 = vld [vmem:[%s5] sm:$0xff]
    %v525 = vld [vmem:[%s5 + $0x8] sm:$0xff]
    %v526 = vld [vmem:[%s5 + $0x10] sm:$0xff]
    %v527 = vld [vmem:[%s5 + $0x18] sm:$0xff]
    %v528 = vld [vmem:[%s5 + $0x20] sm:$0xff]
    %v529 = vld [vmem:[%s5 + $0x28] sm:$0xff]
    %v530 = vld [vmem:[%s5 + $0x30] sm:$0xff]
    %v531 = vld [vmem:[%s5 + $0x38] sm:$0x33]
    %v532 = vpack.c.bf16 %v516, %v514
    %s533 = scalar_lea.vmem %s5, 64
    %v534 = vld [vmem:[%s533] sm:$0xff]
    %v535 = vld [vmem:[%s533 + $0x8] sm:$0xff]
    %v536 = vld [vmem:[%s533 + $0x10] sm:$0xff]
    %v537 = vld [vmem:[%s533 + $0x18] sm:$0xff]
    %v538 = vld [vmem:[%s533 + $0x20] sm:$0xff]
    %v539 = vld [vmem:[%s533 + $0x28] sm:$0xff]
    %v540 = vld [vmem:[%s533 + $0x30] sm:$0xff]
    %v541 = vld [vmem:[%s533 + $0x38] sm:$0x33]
    %v550 = vunpack.c.l.b16 %v534
    %v551 = vunpack.c.h.b16 %v534
    %v552 = vunpack.c.l.b16 %v535
    %v553 = vunpack.c.h.b16 %v535
    %v554 = vunpack.c.l.b16 %v536
    %v555 = vunpack.c.h.b16 %v536
    %v556 = vunpack.c.l.b16 %v537
    %v557 = vunpack.c.h.b16 %v537
    %v558 = vunpack.c.l.b16 %v538
    %v559 = vunpack.c.h.b16 %v538
    %v560 = vunpack.c.l.b16 %v539
    %v561 = vunpack.c.h.b16 %v539
    %v562 = vunpack.c.l.b16 %v540
    %v563 = vunpack.c.h.b16 %v540
    %v564 = vunpack.c.l.b16 %v541
    %v565 = vunpack.c.h.b16 %v541
    %v566 = vpack.c.b16 %v552, %v550
    %v567 = vpack.c.b16 %v553, %v551
    %v568 = vpack.c.b16 %v556, %v554
    %v569 = vpack.c.b16 %v557, %v555
    %v570 = vpack.c.b16 %v560, %v558
    %v571 = vpack.c.b16 %v561, %v559
    %v572 = vpack.c.b16 %v564, %v562
    %v573 = vpack.c.b16 %v565, %v563
    %vm580 = vcmask 490496
    %v582 = vsel %vm580, %v532, 0
    %vm584 = vcmask 1045504
    %v586 = vsel %vm584, %v572, 0
    %v589 = vsel %vm584, %v573, 0
    %591 = vmatpush.bf16.msra.mxu0 0
    %592 = vmatpush.bf16.msra.mxu0 0
    %593 = vmatpush.bf16.msra.mxu0 0
    %594 = vmatpush.bf16.msra.mxu0 0
    %595 = vmatpush.bf16.msra.mxu0 %v586
    %596 = vmatpush.bf16.msra.mxu0 %v570
    %597 = vmatpush.bf16.msra.mxu0 %v568
    %598 = vmatpush.bf16.msra.mxu0 %v566
    %599 = vmatmul.bf16.gmra.mxu0 %v582
    %v600 = vpop.f32.mrf.mxu0
    %v601 = vadd.f32 0.0, %v600
    %v602 = vpop.f32.mrf.mxu0
    %v603 = vadd.f32 0.0, %v602
    %604 = vdwg.mxu0
    %605 = vmatpush.bf16.msra.mxu0 0
    %606 = vmatpush.bf16.msra.mxu0 0
    %607 = vmatpush.bf16.msra.mxu0 0
    %608 = vmatpush.bf16.msra.mxu0 0
    %609 = vmatpush.bf16.msra.mxu0 %v589
    %610 = vmatpush.bf16.msra.mxu0 %v571
    %611 = vmatpush.bf16.msra.mxu0 %v569
    %612 = vmatpush.bf16.msra.mxu0 %v567
    %613 = vmatmul.bf16.gmra.mxu0 %v582
    %v614 = vpop.f32.mrf.mxu0
    %v615 = vadd.f32 0.0, %v614
    %v616 = vpop.f32.mrf.mxu0
    %v617 = vadd.f32 0.0, %v616
    %618 = vdwg.mxu0
    %v627 = vunpack.c.l.b16 %v524
    %v628 = vunpack.c.h.b16 %v524
    %v629 = vunpack.c.l.b16 %v525
    %v630 = vunpack.c.h.b16 %v525
    %v631 = vunpack.c.l.b16 %v526
    %v632 = vunpack.c.h.b16 %v526
    %v633 = vunpack.c.l.b16 %v527
    %v634 = vunpack.c.h.b16 %v527
    %v635 = vunpack.c.l.b16 %v528
    %v636 = vunpack.c.h.b16 %v528
    %v637 = vunpack.c.l.b16 %v529
    %v638 = vunpack.c.h.b16 %v529
    %v639 = vunpack.c.l.b16 %v530
    %v640 = vunpack.c.h.b16 %v530
    %v641 = vunpack.c.l.b16 %v531
    %v642 = vunpack.c.h.b16 %v531
    %v643 = vpack.c.b16 %v629, %v627
    %v644 = vpack.c.b16 %v630, %v628
    %v645 = vpack.c.b16 %v633, %v631
    %v646 = vpack.c.b16 %v634, %v632
    %v647 = vpack.c.b16 %v637, %v635
    %v648 = vpack.c.b16 %v638, %v636
    %v649 = vpack.c.b16 %v641, %v639
    %v650 = vpack.c.b16 %v642, %v640
    %v658 = vsel %vm580, %v523, 0
    %v661 = vsel %vm584, %v649, 0
    %v664 = vsel %vm584, %v650, 0
    %666 = vmatpush.bf16.msra.mxu0 0
    %667 = vmatpush.bf16.msra.mxu0 0
    %668 = vmatpush.bf16.msra.mxu0 0
    %669 = vmatpush.bf16.msra.mxu0 0
    %670 = vmatpush.bf16.msra.mxu0 %v661
    %671 = vmatpush.bf16.msra.mxu0 %v647
    %672 = vmatpush.bf16.msra.mxu0 %v645
    %673 = vmatpush.bf16.msra.mxu0 %v643
    %674 = vmatmul.bf16.gmra.mxu0 %v658
    %v675 = vpop.f32.mrf.mxu0
    %v676 = vadd.f32 %v601, %v675
    %v677 = vpop.f32.mrf.mxu0
    %v678 = vadd.f32 %v603, %v677
    %679 = vdwg.mxu0
    %680 = vmatpush.bf16.msra.mxu0 0
    %681 = vmatpush.bf16.msra.mxu0 0
    %682 = vmatpush.bf16.msra.mxu0 0
    %683 = vmatpush.bf16.msra.mxu0 0
    %684 = vmatpush.bf16.msra.mxu0 %v664
    %685 = vmatpush.bf16.msra.mxu0 %v648
    %686 = vmatpush.bf16.msra.mxu0 %v646
    %687 = vmatpush.bf16.msra.mxu0 %v644
    %688 = vmatmul.bf16.gmra.mxu0 %v658
    %v689 = vpop.f32.mrf.mxu0
    %v690 = vadd.f32 %v615, %v689
    %v691 = vpop.f32.mrf.mxu0
    %v692 = vadd.f32 %v617, %v691
    %693 = vdwg.mxu0
    %v694 = vpack.c.bf16 %v521, %v519
    %s695 = scalar_lea.vmem %s5, 128
    %v696 = vld [vmem:[%s695] sm:$0xff]
    %v697 = vld [vmem:[%s695 + $0x8] sm:$0xff]
    %v698 = vld [vmem:[%s695 + $0x10] sm:$0xff]
    %v699 = vld [vmem:[%s695 + $0x18] sm:$0xff]
    %v700 = vld [vmem:[%s695 + $0x20] sm:$0xff]
    %v701 = vld [vmem:[%s695 + $0x28] sm:$0xff]
    %v702 = vld [vmem:[%s695 + $0x30] sm:$0xff]
    %v703 = vld [vmem:[%s695 + $0x38] sm:$0x33]
    %v712 = vunpack.c.l.b16 %v696
    %v713 = vunpack.c.h.b16 %v696
    %v714 = vunpack.c.l.b16 %v697
    %v715 = vunpack.c.h.b16 %v697
    %v716 = vunpack.c.l.b16 %v698
    %v717 = vunpack.c.h.b16 %v698
    %v718 = vunpack.c.l.b16 %v699
    %v719 = vunpack.c.h.b16 %v699
    %v720 = vunpack.c.l.b16 %v700
    %v721 = vunpack.c.h.b16 %v700
    %v722 = vunpack.c.l.b16 %v701
    %v723 = vunpack.c.h.b16 %v701
    %v724 = vunpack.c.l.b16 %v702
    %v725 = vunpack.c.h.b16 %v702
    %v726 = vunpack.c.l.b16 %v703
    %v727 = vunpack.c.h.b16 %v703
    %v728 = vpack.c.b16 %v714, %v712
    %v729 = vpack.c.b16 %v715, %v713
    %v730 = vpack.c.b16 %v718, %v716
    %v731 = vpack.c.b16 %v719, %v717
    %v732 = vpack.c.b16 %v722, %v720
    %v733 = vpack.c.b16 %v723, %v721
    %v734 = vpack.c.b16 %v726, %v724
    %v735 = vpack.c.b16 %v727, %v725
    %v743 = vsel %vm580, %v694, 0
    %v746 = vsel %vm584, %v734, 0
    %v749 = vsel %vm584, %v735, 0
    %751 = vmatpush.bf16.msra.mxu0 0
    %752 = vmatpush.bf16.msra.mxu0 0
    %753 = vmatpush.bf16.msra.mxu0 0
    %754 = vmatpush.bf16.msra.mxu0 0
    %755 = vmatpush.bf16.msra.mxu0 %v746
    %756 = vmatpush.bf16.msra.mxu0 %v732
    %757 = vmatpush.bf16.msra.mxu0 %v730
    %758 = vmatpush.bf16.msra.mxu0 %v728
    %759 = vmatmul.bf16.gmra.mxu0 %v743
    %v760 = vpop.f32.mrf.mxu0
    %v761 = vadd.f32 0.0, %v760
    %v762 = vpop.f32.mrf.mxu0
    %v763 = vadd.f32 0.0, %v762
    %764 = vdwg.mxu0
    %765 = vmatpush.bf16.msra.mxu0 0
    %766 = vmatpush.bf16.msra.mxu0 0
    %767 = vmatpush.bf16.msra.mxu0 0
    %768 = vmatpush.bf16.msra.mxu0 0
    %769 = vmatpush.bf16.msra.mxu0 %v749
    %770 = vmatpush.bf16.msra.mxu0 %v733
    %771 = vmatpush.bf16.msra.mxu0 %v731
    %772 = vmatpush.bf16.msra.mxu0 %v729
    %773 = vmatmul.bf16.gmra.mxu0 %v743
    %v774 = vpop.f32.mrf.mxu0
    %v775 = vadd.f32 0.0, %v774
    %v776 = vpop.f32.mrf.mxu0
    %v777 = vadd.f32 0.0, %v776
    %778 = vdwg.mxu0
    %v779 = vadd.f32 %v676, %v761
    %v780 = vadd.f32 %v690, %v775
    %v781 = vadd.f32 %v678, %v763
    %v782 = vadd.f32 %v692, %v777
    %v783 = vld [vmem:[%s6] sm:$0x3]
    %v785 = vperm.slane %v783, 0
    %v786 = vperm.slane %v783, 1
    %v789 = vadd.f32 %v779, %v785
    %v790 = vadd.f32 %v780, %v786
    %v791 = vadd.f32 %v781, %v785
    %v792 = vadd.f32 %v782, %v786
    %v793 = vmax.f32 %v789, 0.0
    %v794 = vmax.f32 %v790, 0.0
    %v795 = vmax.f32 %v791, 0.0
    %v796 = vmax.f32 %v792, 0.0
    %v797 = vpack.c.bf16 %v795, %v793
    %v798 = vpack.c.bf16 %v796, %v794
    %v799 = vld [vmem:[%s7] sm:$0xf]
    %v800 = vld [vmem:[%s7 + $0x4] sm:$0xf]
    %v801 = vld [vmem:[%s7 + $0x8] sm:$0xf]
    %v805 = vunpack.c.l.b16 %v799
    %v806 = vunpack.c.l.b16 %v800
    %v807 = vunpack.c.l.b16 %v801
    %v808 = vpack.c.b16 %v806, %v805
    %v809 = vpack.c.b16 %v807, %v807
    %vm810 = vcmask 130048
    %v812 = vsel %vm810, %v808, 0
    %v815 = vsel %vm810, %v809, 0
    %817 = vmatpush.bf16.msra.mxu0 0
    %818 = vmatpush.bf16.msra.mxu0 0
    %819 = vmatpush.bf16.msra.mxu0 0
    %820 = vmatpush.bf16.msra.mxu0 0
    %821 = vmatpush.bf16.msra.mxu0 0
    %822 = vmatpush.bf16.msra.mxu0 0
    %823 = vmatpush.bf16.msra.mxu0 0
    %824 = vmatpush.bf16.msra.mxu0 %v797
    %825 = vmatmul.bf16.gmra.mxu0 %v812
    %v826 = vpop.f32.mrf.mxu0
    %v827 = vadd.f32 0.0, %v826
    %v828 = vpop.f32.mrf.mxu0
    %v829 = vadd.f32 0.0, %v828
    %830 = vmatmul.bf16.gmra.mxu0 %v815
    %v831 = vpop.f32.mrf.mxu0
    %v832 = vadd.f32 0.0, %v831
    %v833 = vpop.f32.mrf.mxu0
    %834 = vdwg.mxu0
    %835 = vmatpush.bf16.msra.mxu0 0
    %836 = vmatpush.bf16.msra.mxu0 0
    %837 = vmatpush.bf16.msra.mxu0 0
    %838 = vmatpush.bf16.msra.mxu0 0
    %839 = vmatpush.bf16.msra.mxu0 0
    %840 = vmatpush.bf16.msra.mxu0 0
    %841 = vmatpush.bf16.msra.mxu0 0
    %842 = vmatpush.bf16.msra.mxu0 %v798
    %843 = vmatmul.bf16.gmra.mxu0 %v812
    %v844 = vpop.f32.mrf.mxu0
    %v845 = vadd.f32 0.0, %v844
    %v846 = vpop.f32.mrf.mxu0
    %v847 = vadd.f32 0.0, %v846
    %848 = vmatmul.bf16.gmra.mxu0 %v815
    %v849 = vpop.f32.mrf.mxu0
    %v850 = vadd.f32 0.0, %v849
    %v851 = vpop.f32.mrf.mxu0
    %852 = vdwg.mxu0
    %v853 = vpack.c.bf16 %v827, %v827
    %v854 = vpack.c.bf16 %v845, %v845
    %v855 = vld [vmem:[#allocation2] sm:$0xff]
    %v856 = vld [vmem:[#allocation2 + $0x8] sm:$0xff]
    %v857 = vld [vmem:[#allocation2 + $0x10] sm:$0xff]
    %v858 = vld [vmem:[#allocation2 + $0x18] sm:$0xff]
    %v859 = vld [vmem:[#allocation2 + $0x20] sm:$0xff]
    %v860 = vld [vmem:[#allocation2 + $0x28] sm:$0xff]
    %v861 = vld [vmem:[#allocation2 + $0x30] sm:$0xff]
    %v862 = vld [vmem:[#allocation2 + $0x38] sm:$0xff]
    %v863 = vld [vmem:[#allocation2 + $0x40] sm:$0xff]
    %v864 = vld [vmem:[#allocation2 + $0x48] sm:$0xff]
    %v865 = vld [vmem:[#allocation2 + $0x50] sm:$0xff]
    %v866 = vld [vmem:[#allocation2 + $0x58] sm:$0xff]
    %v867 = vld [vmem:[#allocation2 + $0x60] sm:$0xff]
    %v868 = vld [vmem:[#allocation2 + $0x68] sm:$0xff]
    %v869 = vld [vmem:[#allocation2 + $0x70] sm:$0xff]
    %v870 = vld [vmem:[#allocation2 + $0x78] sm:$0xff]
    %v871 = vld [vmem:[#allocation2 + $0x80] sm:$0xff]
    %v872 = vld [vmem:[#allocation2 + $0x88] sm:$0xff]
    %v873 = vld [vmem:[#allocation2 + $0x90] sm:$0xff]
    %v874 = vld [vmem:[#allocation2 + $0x98] sm:$0xff]
    %v875 = vpack.c.bf16 %v829, %v829
    %v876 = vpack.c.bf16 %v847, %v847
    %s877 = scalar_lea.vmem [#allocation2], 160
    %v878 = vld [vmem:[%s877] sm:$0xff]
    %v879 = vld [vmem:[%s877 + $0x8] sm:$0xff]
    %v880 = vld [vmem:[%s877 + $0x10] sm:$0xff]
    %v881 = vld [vmem:[%s877 + $0x18] sm:$0xff]
    %v882 = vld [vmem:[%s877 + $0x20] sm:$0xff]
    %v883 = vld [vmem:[%s877 + $0x28] sm:$0xff]
    %v884 = vld [vmem:[%s877 + $0x30] sm:$0xff]
    %v885 = vld [vmem:[%s877 + $0x38] sm:$0xff]
    %v886 = vld [vmem:[%s877 + $0x40] sm:$0xff]
    %v887 = vld [vmem:[%s877 + $0x48] sm:$0xff]
    %v888 = vld [vmem:[%s877 + $0x50] sm:$0xff]
    %v889 = vld [vmem:[%s877 + $0x58] sm:$0xff]
    %v890 = vld [vmem:[%s877 + $0x60] sm:$0xff]
    %v891 = vld [vmem:[%s877 + $0x68] sm:$0xff]
    %v892 = vld [vmem:[%s877 + $0x70] sm:$0xff]
    %v893 = vld [vmem:[%s877 + $0x78] sm:$0xff]
    %v894 = vld [vmem:[%s877 + $0x80] sm:$0xff]
    %v895 = vld [vmem:[%s877 + $0x88] sm:$0xff]
    %v896 = vld [vmem:[%s877 + $0x90] sm:$0xff]
    %v897 = vld [vmem:[%s877 + $0x98] sm:$0xff]
    %v918 = vunpack.c.l.b16 %v878
    %v919 = vunpack.c.h.b16 %v878
    %v920 = vunpack.c.l.b16 %v879
    %v921 = vunpack.c.h.b16 %v879
    %v922 = vunpack.c.l.b16 %v880
    %v923 = vunpack.c.h.b16 %v880
    %v924 = vunpack.c.l.b16 %v881
    %v925 = vunpack.c.h.b16 %v881
    %v926 = vunpack.c.l.b16 %v882
    %v927 = vunpack.c.h.b16 %v882
    %v928 = vunpack.c.l.b16 %v883
    %v929 = vunpack.c.h.b16 %v883
    %v930 = vunpack.c.l.b16 %v884
    %v931 = vunpack.c.h.b16 %v884
    %v932 = vunpack.c.l.b16 %v885
    %v933 = vunpack.c.h.b16 %v885
    %v934 = vunpack.c.l.b16 %v886
    %v935 = vunpack.c.h.b16 %v886
    %v936 = vunpack.c.l.b16 %v887
    %v937 = vunpack.c.h.b16 %v887
    %v938 = vunpack.c.l.b16 %v888
    %v939 = vunpack.c.h.b16 %v888
    %v940 = vunpack.c.l.b16 %v889
    %v941 = vunpack.c.h.b16 %v889
    %v942 = vunpack.c.l.b16 %v890
    %v943 = vunpack.c.h.b16 %v890
    %v944 = vunpack.c.l.b16 %v891
    %v945 = vunpack.c.h.b16 %v891
    %v946 = vunpack.c.l.b16 %v892
    %v947 = vunpack.c.h.b16 %v892
    %v948 = vunpack.c.l.b16 %v893
    %v949 = vunpack.c.h.b16 %v893
    %v950 = vunpack.c.l.b16 %v894
    %v951 = vunpack.c.h.b16 %v894
    %v952 = vunpack.c.l.b16 %v895
    %v953 = vunpack.c.h.b16 %v895
    %v954 = vunpack.c.l.b16 %v896
    %v955 = vunpack.c.h.b16 %v896
    %v956 = vunpack.c.l.b16 %v897
    %v957 = vunpack.c.h.b16 %v897
    %v958 = vpack.c.b16 %v920, %v918
    %v959 = vpack.c.b16 %v921, %v919
    %v960 = vpack.c.b16 %v924, %v922
    %v961 = vpack.c.b16 %v925, %v923
    %v962 = vpack.c.b16 %v928, %v926
    %v963 = vpack.c.b16 %v929, %v927
    %v964 = vpack.c.b16 %v932, %v930
    %v965 = vpack.c.b16 %v933, %v931
    %v966 = vpack.c.b16 %v936, %v934
    %v967 = vpack.c.b16 %v937, %v935
    %v968 = vpack.c.b16 %v940, %v938
    %v969 = vpack.c.b16 %v941, %v939
    %v970 = vpack.c.b16 %v944, %v942
    %v971 = vpack.c.b16 %v945, %v943
    %v972 = vpack.c.b16 %v948, %v946
    %v973 = vpack.c.b16 %v949, %v947
    %v974 = vpack.c.b16 %v952, %v950
    %v975 = vpack.c.b16 %v953, %v951
    %v976 = vpack.c.b16 %v956, %v954
    %v977 = vpack.c.b16 %v957, %v955
    %v999 = vsel %vm489, %v876, 0
    %1001 = vmatpush.bf16.msra.mxu0 %v972
    %1002 = vmatpush.bf16.msra.mxu0 %v970
    %1003 = vmatpush.bf16.msra.mxu0 %v968
    %1004 = vmatpush.bf16.msra.mxu0 %v966
    %1005 = vmatpush.bf16.msra.mxu0 %v964
    %1006 = vmatpush.bf16.msra.mxu0 %v962
    %1007 = vmatpush.bf16.msra.mxu0 %v960
    %1008 = vmatpush.bf16.msra.mxu0 %v958
    %1009 = vmatmul.bf16.gmra.mxu0 %v875
    %v1010 = vpop.f32.mrf.mxu0
    %v1011 = vadd.f32 0.0, %v1010
    %v1012 = vpop.f32.mrf.mxu0
    %1013 = vdwg.mxu0
    %1014 = vmatpush.bf16.msra.mxu0 0
    %1015 = vmatpush.bf16.msra.mxu0 0
    %1016 = vmatpush.bf16.msra.mxu0 0
    %1017 = vmatpush.bf16.msra.mxu0 0
    %1018 = vmatpush.bf16.msra.mxu0 0
    %1019 = vmatpush.bf16.msra.mxu0 0
    %1020 = vmatpush.bf16.msra.mxu0 %v976
    %1021 = vmatpush.bf16.msra.mxu0 %v974
    %1022 = vmatmul.bf16.gmra.mxu0 %v999
    %v1023 = vpop.f32.mrf.mxu0
    %v1024 = vadd.f32 %v1011, %v1023
    %v1025 = vpop.f32.mrf.mxu0
    %1026 = vdwg.mxu0
    %1027 = vmatpush.bf16.msra.mxu0 %v973
    %1028 = vmatpush.bf16.msra.mxu0 %v971
    %1029 = vmatpush.bf16.msra.mxu0 %v969
    %1030 = vmatpush.bf16.msra.mxu0 %v967
    %1031 = vmatpush.bf16.msra.mxu0 %v965
    %1032 = vmatpush.bf16.msra.mxu0 %v963
    %1033 = vmatpush.bf16.msra.mxu0 %v961
    %1034 = vmatpush.bf16.msra.mxu0 %v959
    %1035 = vmatmul.bf16.gmra.mxu0 %v875
    %v1036 = vpop.f32.mrf.mxu0
    %v1037 = vadd.f32 0.0, %v1036
    %v1038 = vpop.f32.mrf.mxu0
    %1039 = vdwg.mxu0
    %1040 = vmatpush.bf16.msra.mxu0 0
    %1041 = vmatpush.bf16.msra.mxu0 0
    %1042 = vmatpush.bf16.msra.mxu0 0
    %1043 = vmatpush.bf16.msra.mxu0 0
    %1044 = vmatpush.bf16.msra.mxu0 0
    %1045 = vmatpush.bf16.msra.mxu0 0
    %1046 = vmatpush.bf16.msra.mxu0 %v977
    %1047 = vmatpush.bf16.msra.mxu0 %v975
    %1048 = vmatmul.bf16.gmra.mxu0 %v999
    %v1049 = vpop.f32.mrf.mxu0
    %v1050 = vadd.f32 %v1037, %v1049
    %v1051 = vpop.f32.mrf.mxu0
    %1052 = vdwg.mxu0
    %v1073 = vunpack.c.l.b16 %v855
    %v1074 = vunpack.c.h.b16 %v855
    %v1075 = vunpack.c.l.b16 %v856
    %v1076 = vunpack.c.h.b16 %v856
    %v1077 = vunpack.c.l.b16 %v857
    %v1078 = vunpack.c.h.b16 %v857
    %v1079 = vunpack.c.l.b16 %v858
    %v1080 = vunpack.c.h.b16 %v858
    %v1081 = vunpack.c.l.b16 %v859
    %v1082 = vunpack.c.h.b16 %v859
    %v1083 = vunpack.c.l.b16 %v860
    %v1084 = vunpack.c.h.b16 %v860
    %v1085 = vunpack.c.l.b16 %v861
    %v1086 = vunpack.c.h.b16 %v861
    %v1087 = vunpack.c.l.b16 %v862
    %v1088 = vunpack.c.h.b16 %v862
    %v1089 = vunpack.c.l.b16 %v863
    %v1090 = vunpack.c.h.b16 %v863
    %v1091 = vunpack.c.l.b16 %v864
    %v1092 = vunpack.c.h.b16 %v864
    %v1093 = vunpack.c.l.b16 %v865
    %v1094 = vunpack.c.h.b16 %v865
    %v1095 = vunpack.c.l.b16 %v866
    %v1096 = vunpack.c.h.b16 %v866
    %v1097 = vunpack.c.l.b16 %v867
    %v1098 = vunpack.c.h.b16 %v867
    %v1099 = vunpack.c.l.b16 %v868
    %v1100 = vunpack.c.h.b16 %v868
    %v1101 = vunpack.c.l.b16 %v869
    %v1102 = vunpack.c.h.b16 %v869
    %v1103 = vunpack.c.l.b16 %v870
    %v1104 = vunpack.c.h.b16 %v870
    %v1105 = vunpack.c.l.b16 %v871
    %v1106 = vunpack.c.h.b16 %v871
    %v1107 = vunpack.c.l.b16 %v872
    %v1108 = vunpack.c.h.b16 %v872
    %v1109 = vunpack.c.l.b16 %v873
    %v1110 = vunpack.c.h.b16 %v873
    %v1111 = vunpack.c.l.b16 %v874
    %v1112 = vunpack.c.h.b16 %v874
    %v1113 = vpack.c.b16 %v1075, %v1073
    %v1114 = vpack.c.b16 %v1076, %v1074
    %v1115 = vpack.c.b16 %v1079, %v1077
    %v1116 = vpack.c.b16 %v1080, %v1078
    %v1117 = vpack.c.b16 %v1083, %v1081
    %v1118 = vpack.c.b16 %v1084, %v1082
    %v1119 = vpack.c.b16 %v1087, %v1085
    %v1120 = vpack.c.b16 %v1088, %v1086
    %v1121 = vpack.c.b16 %v1091, %v1089
    %v1122 = vpack.c.b16 %v1092, %v1090
    %v1123 = vpack.c.b16 %v1095, %v1093
    %v1124 = vpack.c.b16 %v1096, %v1094
    %v1125 = vpack.c.b16 %v1099, %v1097
    %v1126 = vpack.c.b16 %v1100, %v1098
    %v1127 = vpack.c.b16 %v1103, %v1101
    %v1128 = vpack.c.b16 %v1104, %v1102
    %v1129 = vpack.c.b16 %v1107, %v1105
    %v1130 = vpack.c.b16 %v1108, %v1106
    %v1131 = vpack.c.b16 %v1111, %v1109
    %v1132 = vpack.c.b16 %v1112, %v1110
    %v1154 = vsel %vm489, %v854, 0
    %1156 = vmatpush.bf16.msra.mxu0 %v1127
    %1157 = vmatpush.bf16.msra.mxu0 %v1125
    %1158 = vmatpush.bf16.msra.mxu0 %v1123
    %1159 = vmatpush.bf16.msra.mxu0 %v1121
    %1160 = vmatpush.bf16.msra.mxu0 %v1119
    %1161 = vmatpush.bf16.msra.mxu0 %v1117
    %1162 = vmatpush.bf16.msra.mxu0 %v1115
    %1163 = vmatpush.bf16.msra.mxu0 %v1113
    %1164 = vmatmul.bf16.gmra.mxu0 %v853
    %v1165 = vpop.f32.mrf.mxu0
    %v1166 = vadd.f32 %v1024, %v1165
    %v1167 = vpop.f32.mrf.mxu0
    %1168 = vdwg.mxu0
    %1169 = vmatpush.bf16.msra.mxu0 0
    %1170 = vmatpush.bf16.msra.mxu0 0
    %1171 = vmatpush.bf16.msra.mxu0 0
    %1172 = vmatpush.bf16.msra.mxu0 0
    %1173 = vmatpush.bf16.msra.mxu0 0
    %1174 = vmatpush.bf16.msra.mxu0 0
    %1175 = vmatpush.bf16.msra.mxu0 %v1131
    %1176 = vmatpush.bf16.msra.mxu0 %v1129
    %1177 = vmatmul.bf16.gmra.mxu0 %v1154
    %v1178 = vpop.f32.mrf.mxu0
    %v1179 = vadd.f32 %v1166, %v1178
    %v1180 = vpop.f32.mrf.mxu0
    %1181 = vdwg.mxu0
    %1182 = vmatpush.bf16.msra.mxu0 %v1128
    %1183 = vmatpush.bf16.msra.mxu0 %v1126
    %1184 = vmatpush.bf16.msra.mxu0 %v1124
    %1185 = vmatpush.bf16.msra.mxu0 %v1122
    %1186 = vmatpush.bf16.msra.mxu0 %v1120
    %1187 = vmatpush.bf16.msra.mxu0 %v1118
    %1188 = vmatpush.bf16.msra.mxu0 %v1116
    %1189 = vmatpush.bf16.msra.mxu0 %v1114
    %1190 = vmatmul.bf16.gmra.mxu0 %v853
    %v1191 = vpop.f32.mrf.mxu0
    %v1192 = vadd.f32 %v1050, %v1191
    %v1193 = vpop.f32.mrf.mxu0
    %1194 = vdwg.mxu0
    %1195 = vmatpush.bf16.msra.mxu0 0
    %1196 = vmatpush.bf16.msra.mxu0 0
    %1197 = vmatpush.bf16.msra.mxu0 0
    %1198 = vmatpush.bf16.msra.mxu0 0
    %1199 = vmatpush.bf16.msra.mxu0 0
    %1200 = vmatpush.bf16.msra.mxu0 0
    %1201 = vmatpush.bf16.msra.mxu0 %v1132
    %1202 = vmatpush.bf16.msra.mxu0 %v1130
    %1203 = vmatmul.bf16.gmra.mxu0 %v1154
    %v1204 = vpop.f32.mrf.mxu0
    %v1205 = vadd.f32 %v1192, %v1204
    %v1206 = vpop.f32.mrf.mxu0
    %1207 = vdwg.mxu0
    %v1208 = vpack.c.bf16 %v832, %v832
    %v1209 = vpack.c.bf16 %v850, %v850
    %s1210 = scalar_lea.vmem [#allocation2], 320
    %v1211 = vld [vmem:[%s1210] sm:$0xff]
    %v1212 = vld [vmem:[%s1210 + $0x8] sm:$0xff]
    %v1213 = vld [vmem:[%s1210 + $0x10] sm:$0xff]
    %v1214 = vld [vmem:[%s1210 + $0x18] sm:$0xff]
    %v1215 = vld [vmem:[%s1210 + $0x20] sm:$0xff]
    %v1216 = vld [vmem:[%s1210 + $0x28] sm:$0xff]
    %v1217 = vld [vmem:[%s1210 + $0x30] sm:$0xff]
    %v1218 = vld [vmem:[%s1210 + $0x38] sm:$0xff]
    %v1219 = vld [vmem:[%s1210 + $0x40] sm:$0xff]
    %v1220 = vld [vmem:[%s1210 + $0x48] sm:$0xff]
    %v1221 = vld [vmem:[%s1210 + $0x50] sm:$0xff]
    %v1222 = vld [vmem:[%s1210 + $0x58] sm:$0xff]
    %v1223 = vld [vmem:[%s1210 + $0x60] sm:$0xff]
    %v1224 = vld [vmem:[%s1210 + $0x68] sm:$0xff]
    %v1225 = vld [vmem:[%s1210 + $0x70] sm:$0xff]
    %v1226 = vld [vmem:[%s1210 + $0x78] sm:$0xff]
    %v1227 = vld [vmem:[%s1210 + $0x80] sm:$0xff]
    %v1228 = vld [vmem:[%s1210 + $0x88] sm:$0xff]
    %v1229 = vld [vmem:[%s1210 + $0x90] sm:$0xff]
    %v1230 = vld [vmem:[%s1210 + $0x98] sm:$0xff]
    %v1251 = vunpack.c.l.b16 %v1211
    %v1252 = vunpack.c.h.b16 %v1211
    %v1253 = vunpack.c.l.b16 %v1212
    %v1254 = vunpack.c.h.b16 %v1212
    %v1255 = vunpack.c.l.b16 %v1213
    %v1256 = vunpack.c.h.b16 %v1213
    %v1257 = vunpack.c.l.b16 %v1214
    %v1258 = vunpack.c.h.b16 %v1214
    %v1259 = vunpack.c.l.b16 %v1215
    %v1260 = vunpack.c.h.b16 %v1215
    %v1261 = vunpack.c.l.b16 %v1216
    %v1262 = vunpack.c.h.b16 %v1216
    %v1263 = vunpack.c.l.b16 %v1217
    %v1264 = vunpack.c.h.b16 %v1217
    %v1265 = vunpack.c.l.b16 %v1218
    %v1266 = vunpack.c.h.b16 %v1218
    %v1267 = vunpack.c.l.b16 %v1219
    %v1268 = vunpack.c.h.b16 %v1219
    %v1269 = vunpack.c.l.b16 %v1220
    %v1270 = vunpack.c.h.b16 %v1220
    %v1271 = vunpack.c.l.b16 %v1221
    %v1272 = vunpack.c.h.b16 %v1221
    %v1273 = vunpack.c.l.b16 %v1222
    %v1274 = vunpack.c.h.b16 %v1222
    %v1275 = vunpack.c.l.b16 %v1223
    %v1276 = vunpack.c.h.b16 %v1223
    %v1277 = vunpack.c.l.b16 %v1224
    %v1278 = vunpack.c.h.b16 %v1224
    %v1279 = vunpack.c.l.b16 %v1225
    %v1280 = vunpack.c.h.b16 %v1225
    %v1281 = vunpack.c.l.b16 %v1226
    %v1282 = vunpack.c.h.b16 %v1226
    %v1283 = vunpack.c.l.b16 %v1227
    %v1284 = vunpack.c.h.b16 %v1227
    %v1285 = vunpack.c.l.b16 %v1228
    %v1286 = vunpack.c.h.b16 %v1228
    %v1287 = vunpack.c.l.b16 %v1229
    %v1288 = vunpack.c.h.b16 %v1229
    %v1289 = vunpack.c.l.b16 %v1230
    %v1290 = vunpack.c.h.b16 %v1230
    %v1291 = vpack.c.b16 %v1253, %v1251
    %v1292 = vpack.c.b16 %v1254, %v1252
    %v1293 = vpack.c.b16 %v1257, %v1255
    %v1294 = vpack.c.b16 %v1258, %v1256
    %v1295 = vpack.c.b16 %v1261, %v1259
    %v1296 = vpack.c.b16 %v1262, %v1260
    %v1297 = vpack.c.b16 %v1265, %v1263
    %v1298 = vpack.c.b16 %v1266, %v1264
    %v1299 = vpack.c.b16 %v1269, %v1267
    %v1300 = vpack.c.b16 %v1270, %v1268
    %v1301 = vpack.c.b16 %v1273, %v1271
    %v1302 = vpack.c.b16 %v1274, %v1272
    %v1303 = vpack.c.b16 %v1277, %v1275
    %v1304 = vpack.c.b16 %v1278, %v1276
    %v1305 = vpack.c.b16 %v1281, %v1279
    %v1306 = vpack.c.b16 %v1282, %v1280
    %v1307 = vpack.c.b16 %v1285, %v1283
    %v1308 = vpack.c.b16 %v1286, %v1284
    %v1309 = vpack.c.b16 %v1289, %v1287
    %v1310 = vpack.c.b16 %v1290, %v1288
    %v1332 = vsel %vm489, %v1209, 0
    %1334 = vmatpush.bf16.msra.mxu0 %v1305
    %1335 = vmatpush.bf16.msra.mxu0 %v1303
    %1336 = vmatpush.bf16.msra.mxu0 %v1301
    %1337 = vmatpush.bf16.msra.mxu0 %v1299
    %1338 = vmatpush.bf16.msra.mxu0 %v1297
    %1339 = vmatpush.bf16.msra.mxu0 %v1295
    %1340 = vmatpush.bf16.msra.mxu0 %v1293
    %1341 = vmatpush.bf16.msra.mxu0 %v1291
    %1342 = vmatmul.bf16.gmra.mxu0 %v1208
    %v1343 = vpop.f32.mrf.mxu0
    %v1344 = vadd.f32 0.0, %v1343
    %v1345 = vpop.f32.mrf.mxu0
    %1346 = vdwg.mxu0
    %1347 = vmatpush.bf16.msra.mxu0 0
    %1348 = vmatpush.bf16.msra.mxu0 0
    %1349 = vmatpush.bf16.msra.mxu0 0
    %1350 = vmatpush.bf16.msra.mxu0 0
    %1351 = vmatpush.bf16.msra.mxu0 0
    %1352 = vmatpush.bf16.msra.mxu0 0
    %1353 = vmatpush.bf16.msra.mxu0 %v1309
    %1354 = vmatpush.bf16.msra.mxu0 %v1307
    %1355 = vmatmul.bf16.gmra.mxu0 %v1332
    %v1356 = vpop.f32.mrf.mxu0
    %v1357 = vadd.f32 %v1344, %v1356
    %v1358 = vpop.f32.mrf.mxu0
    %1359 = vdwg.mxu0
    %1360 = vmatpush.bf16.msra.mxu0 %v1306
    %1361 = vmatpush.bf16.msra.mxu0 %v1304
    %1362 = vmatpush.bf16.msra.mxu0 %v1302
    %1363 = vmatpush.bf16.msra.mxu0 %v1300
    %1364 = vmatpush.bf16.msra.mxu0 %v1298
    %1365 = vmatpush.bf16.msra.mxu0 %v1296
    %1366 = vmatpush.bf16.msra.mxu0 %v1294
    %1367 = vmatpush.bf16.msra.mxu0 %v1292
    %1368 = vmatmul.bf16.gmra.mxu0 %v1208
    %v1369 = vpop.f32.mrf.mxu0
    %v1370 = vadd.f32 0.0, %v1369
    %v1371 = vpop.f32.mrf.mxu0
    %1372 = vdwg.mxu0
    %1373 = vmatpush.bf16.msra.mxu0 0
    %1374 = vmatpush.bf16.msra.mxu0 0
    %1375 = vmatpush.bf16.msra.mxu0 0
    %1376 = vmatpush.bf16.msra.mxu0 0
    %1377 = vmatpush.bf16.msra.mxu0 0
    %1378 = vmatpush.bf16.msra.mxu0 0
    %1379 = vmatpush.bf16.msra.mxu0 %v1310
    %1380 = vmatpush.bf16.msra.mxu0 %v1308
    %1381 = vmatmul.bf16.gmra.mxu0 %v1332
    %v1382 = vpop.f32.mrf.mxu0
    %v1383 = vadd.f32 %v1370, %v1382
    %v1384 = vpop.f32.mrf.mxu0
    %1385 = vdwg.mxu0
    %v1386 = vadd.f32 %v1179, %v1357
    %v1387 = vadd.f32 %v1205, %v1383
    %v1388 = vld [vmem:[%s9] sm:$0x3]
    %v1390 = vperm.slane %v1388, 0
    %v1391 = vperm.slane %v1388, 1
    %v1394 = vadd.f32 %v1386, %v1390
    %v1395 = vadd.f32 %v1387, %v1391
    %v1396 = vmax.f32 %v1394, 0.0
    %v1397 = vmax.f32 %v1395, 0.0
    %v1398 = vld [vmem:[%s10] sm:$0x1]
    %v1399 = vpack.c.bf16 %v1396, %v1396
    %v1400 = vpack.c.bf16 %v1397, %v1397
    %vm1401 = vcmask 64512
    %v1403 = vsel %vm1401, %v1398, 0
    %v1406 = vsel %vm267, %v1399, 0
    %v1409 = vsel %vm267, %v1400, 0
    %1411 = vmatpush.bf16.msra.mxu0 0
    %1412 = vmatpush.bf16.msra.mxu0 0
    %1413 = vmatpush.bf16.msra.mxu0 0
    %1414 = vmatpush.bf16.msra.mxu0 0
    %1415 = vmatpush.bf16.msra.mxu0 0
    %1416 = vmatpush.bf16.msra.mxu0 0
    %1417 = vmatpush.bf16.msra.mxu0 0
    %1418 = vmatpush.bf16.msra.mxu0 %v1406
    %1419 = vmatmul.bf16.gmra.mxu0 %v1403
    %v1420 = vpop.f32.mrf.mxu0
    %v1421 = vadd.f32 0.0, %v1420
    %v1422 = vpop.f32.mrf.mxu0
    %1423 = vdwg.mxu0
    %1424 = vmatpush.bf16.msra.mxu0 0
    %1425 = vmatpush.bf16.msra.mxu0 0
    %1426 = vmatpush.bf16.msra.mxu0 0
    %1427 = vmatpush.bf16.msra.mxu0 0
    %1428 = vmatpush.bf16.msra.mxu0 0
    %1429 = vmatpush.bf16.msra.mxu0 0
    %1430 = vmatpush.bf16.msra.mxu0 0
    %1431 = vmatpush.bf16.msra.mxu0 %v1409
    %1432 = vmatmul.bf16.gmra.mxu0 %v1403
    %v1433 = vpop.f32.mrf.mxu0
    %v1434 = vadd.f32 0.0, %v1433
    %v1435 = vpop.f32.mrf.mxu0
    %1436 = vdwg.mxu0
    %v1437 = vpack.c.bf16 %v1421, %v1421
    %v1438 = vpack.c.bf16 %v1434, %v1434
    %v1439 = vld [vmem:[%s11] sm:$0xf]
    %v1440 = vld [vmem:[%s11 + $0x4] sm:$0xf]
    %v1441 = vld [vmem:[%s11 + $0x8] sm:$0xf]
    %v1442 = vld [vmem:[%s11 + $0xc] sm:$0xf]
    %v1443 = vld [vmem:[%s11 + $0x10] sm:$0xf]
    %v1444 = vld [vmem:[%s11 + $0x14] sm:$0xf]
    %v1445 = vld [vmem:[%s11 + $0x18] sm:$0xf]
    %v1446 = vld [vmem:[%s11 + $0x1c] sm:$0xf]
    %v1447 = vld [vmem:[%s11 + $0x20] sm:$0xf]
    %v1448 = vld [vmem:[%s11 + $0x24] sm:$0xf]
    %v1449 = vld [vmem:[%s11 + $0x28] sm:$0xf]
    %v1450 = vld [vmem:[%s11 + $0x2c] sm:$0xf]
    %v1451 = vld [vmem:[%s11 + $0x30] sm:$0xf]
    %v1452 = vld [vmem:[%s11 + $0x34] sm:$0xf]
    %v1453 = vld [vmem:[%s11 + $0x38] sm:$0xf]
    %v1454 = vld [vmem:[%s11 + $0x3c] sm:$0xf]
    %v1455 = vld [vmem:[%s11 + $0x40] sm:$0xf]
    %v1456 = vld [vmem:[%s11 + $0x44] sm:$0xf]
    %v1457 = vld [vmem:[%s11 + $0x48] sm:$0xf]
    %v1458 = vld [vmem:[%s11 + $0x4c] sm:$0xf]
    %v1459 = vld [vmem:[%s12] sm:$0x1]
    %v1461 = vperm.slane %v1459, 0
    %v1483 = vunpack.c.l.b16 %v1439
    %v1484 = vunpack.c.l.b16 %v1440
    %v1485 = vunpack.c.l.b16 %v1441
    %v1486 = vunpack.c.l.b16 %v1442
    %v1487 = vunpack.c.l.b16 %v1443
    %v1488 = vunpack.c.l.b16 %v1444
    %v1489 = vunpack.c.l.b16 %v1445
    %v1490 = vunpack.c.l.b16 %v1446
    %v1491 = vunpack.c.l.b16 %v1447
    %v1492 = vunpack.c.l.b16 %v1448
    %v1493 = vunpack.c.l.b16 %v1449
    %v1494 = vunpack.c.l.b16 %v1450
    %v1495 = vunpack.c.l.b16 %v1451
    %v1496 = vunpack.c.l.b16 %v1452
    %v1497 = vunpack.c.l.b16 %v1453
    %v1498 = vunpack.c.l.b16 %v1454
    %v1499 = vunpack.c.l.b16 %v1455
    %v1500 = vunpack.c.l.b16 %v1456
    %v1501 = vunpack.c.l.b16 %v1457
    %v1502 = vunpack.c.l.b16 %v1458
    %v1503 = vpack.c.b16 %v1484, %v1483
    %v1504 = vpack.c.b16 %v1486, %v1485
    %v1505 = vpack.c.b16 %v1488, %v1487
    %v1506 = vpack.c.b16 %v1490, %v1489
    %v1507 = vpack.c.b16 %v1492, %v1491
    %v1508 = vpack.c.b16 %v1494, %v1493
    %v1509 = vpack.c.b16 %v1496, %v1495
    %v1510 = vpack.c.b16 %v1498, %v1497
    %v1511 = vpack.c.b16 %v1500, %v1499
    %v1512 = vpack.c.b16 %v1502, %v1501
    %v1524 = vsel %vm489, %v1438, 0
    %1526 = vmatpush.bf16.msra.mxu0 %v1510
    %1527 = vmatpush.bf16.msra.mxu0 %v1509
    %1528 = vmatpush.bf16.msra.mxu0 %v1508
    %1529 = vmatpush.bf16.msra.mxu0 %v1507
    %1530 = vmatpush.bf16.msra.mxu0 %v1506
    %1531 = vmatpush.bf16.msra.mxu0 %v1505
    %1532 = vmatpush.bf16.msra.mxu0 %v1504
    %1533 = vmatpush.bf16.msra.mxu0 %v1503
    %1534 = vmatmul.bf16.gmra.mxu0 %v1437
    %v1535 = vpop.f32.mrf.mxu0
    %v1536 = vadd.f32 %v1461, %v1535
    %v1537 = vpop.f32.mrf.mxu0
    %1538 = vdwg.mxu0
    %1539 = vmatpush.bf16.msra.mxu0 0
    %1540 = vmatpush.bf16.msra.mxu0 0
    %1541 = vmatpush.bf16.msra.mxu0 0
    %1542 = vmatpush.bf16.msra.mxu0 0
    %1543 = vmatpush.bf16.msra.mxu0 0
    %1544 = vmatpush.bf16.msra.mxu0 0
    %1545 = vmatpush.bf16.msra.mxu0 %v1512
    %1546 = vmatpush.bf16.msra.mxu0 %v1511
    %1547 = vmatmul.bf16.gmra.mxu0 %v1524
    %v1548 = vpop.f32.mrf.mxu0
    %v1549 = vadd.f32 %v1536, %v1548
    %v1550 = vpop.f32.mrf.mxu0
    %1551 = vdwg.mxu0
    %v1552 = vmax.f32 %v1549, 0.0
    %v1553 = vpack.c.bf16 %v1552, %v1552
    %v1554 = vld [vmem:[%s13] sm:$0xf]
    %v1555 = vld [vmem:[%s13 + $0x4] sm:$0xf]
    %v1556 = vld [vmem:[%s13 + $0x8] sm:$0xf]
    %v1557 = vld [vmem:[%s13 + $0xc] sm:$0xf]
    %v1558 = vld [vmem:[%s13 + $0x10] sm:$0xf]
    %v1559 = vld [vmem:[%s13 + $0x14] sm:$0xf]
    %v1560 = vld [vmem:[%s13 + $0x18] sm:$0xf]
    %v1561 = vld [vmem:[%s13 + $0x1c] sm:$0xf]
    %v1562 = vld [vmem:[%s14] sm:$0x1]
    %v1564 = vperm.slane %v1562, 0
    %v1574 = vunpack.c.l.b16 %v1554
    %v1575 = vunpack.c.l.b16 %v1555
    %v1576 = vunpack.c.l.b16 %v1556
    %v1577 = vunpack.c.l.b16 %v1557
    %v1578 = vunpack.c.l.b16 %v1558
    %v1579 = vunpack.c.l.b16 %v1559
    %v1580 = vunpack.c.l.b16 %v1560
    %v1581 = vunpack.c.l.b16 %v1561
    %v1582 = vpack.c.b16 %v1575, %v1574
    %v1583 = vpack.c.b16 %v1577, %v1576
    %v1584 = vpack.c.b16 %v1579, %v1578
    %v1585 = vpack.c.b16 %v1581, %v1580
    %v1591 = vsel %vm122, %v1553, 0
    %1593 = vmatpush.bf16.msra.mxu0 0
    %1594 = vmatpush.bf16.msra.mxu0 0
    %1595 = vmatpush.bf16.msra.mxu0 0
    %1596 = vmatpush.bf16.msra.mxu0 0
    %1597 = vmatpush.bf16.msra.mxu0 %v1585
    %1598 = vmatpush.bf16.msra.mxu0 %v1584
    %1599 = vmatpush.bf16.msra.mxu0 %v1583
    %1600 = vmatpush.bf16.msra.mxu0 %v1582
    %1601 = vmatmul.bf16.gmra.mxu0 %v1591
    %v1602 = vpop.f32.mrf.mxu0
    %v1603 = vadd.f32 %v1564, %v1602
    %v1604 = vpop.f32.mrf.mxu0
    %1605 = vdwg.mxu0
    %vm1606 = vcmask 25600
    %1607 = vst.msk [vmem:[#allocation5] sm:$0x3] %vm1606, %v1603
    // Predicated region
    $region66: #{novq_perception_forward.1} parent=1 // pred_check
      _
    $region67: #{novq_perception_forward.1} parent=1 // pred_check_branch
      %1609 = sbr.rel (0) target = $region69
    $region68: #{novq_perception_forward.1} parent=1 // pred_region
      %1611 = vsyncadd [#allocation4], 0
      %s1613 = sshll.u32 [#allocation5], 4
      %s1614 = int_to_ptr.vmem [resolvable:$true] %s1613
      %s1615 = sshll.u32 %s15, 4
      %s1616 = int_to_ptr.hbm [resolvable:$true] %s1615
      %1618 = dma.vmem_to_hbm [thread:$0]  %s1614, 32, %s1616, [#allocation4]
    $region69: #{novq_perception_forward.1} parent=1 // pred_fallthru
      _
    // Predicated region
    $region70: #{novq_perception_forward.1} parent=1 // pred_check
      _
    $region71: #{novq_perception_forward.1} parent=1 // pred_check_branch
      %1620 = sbr.rel (0) target = $region73
    $region72: #{novq_perception_forward.1} parent=1 // pred_region
      %1622 = dma.done [#allocation4], 32
    $region73: #{novq_perception_forward.1} parent=1 // pred_fallthru
      _
    %1623 = vsyncpa [#allocation3], 1
    %1624 = vsyncpa [#allocation4], 1

</llo_original>
